<compile_context>
chip_gen: v6e
topology: v6e:2x2x1
jax: 0.10.0
libtpu: 0.0.40
codegen_flags: <defaults>
</compile_context>

<pallas_src>
import functools

import jax
import jax.numpy as jnp
from jax import lax
from jax.experimental import pallas as pl
from jax.experimental.pallas import tpu as pltpu


# ---------------- packed per-channel parameter-slab layout (shared by wrapper & kernel) -------
_SEGS = (
    ("dw1_tap", 9), ("dw1_b", 1),
    ("pw1_b", 1),
    ("rep1_tap", 9), ("rep1_m", 1), ("rep1_b", 1),
    ("pw2_b", 1),
    ("rep2_tap", 9), ("rep2_m", 1), ("rep2_b", 1),
    ("bn_s", 1), ("bn_b", 1),
)


def _param_layout():
    off, o = {}, 0
    for name, sz in _SEGS:
        off[name] = (o, sz)
        o += sz
    return off, o


# ------------------------------------- the kernel --------------------------------------------
def repcib_kernel(x_ref, par_ref, mask_ref, m1_ref, m2_ref, o_ref, *, W, add, mxu_bf16):
    # x_ref / o_ref: (1, C_pad, HW)   par_ref: (C_pad, 36)   mask_ref: (8, HW)
    # m1_ref / m2_ref: (C_pad, C_pad) BN-folded 1x1-mix matrices (out, in)
    _, _, HW = x_ref.shape
    off, _ = _param_layout()

    x = x_ref[0]                          # (C_pad, HW) lane-dense f32
    par = par_ref[...]                    # (C_pad, 36) per-channel constants (BN folded)
    wl = mask_ref[0:1, :]                 # width mask: col-1 neighbour valid
    wr = mask_ref[1:2, :]                 # width mask: col+1 neighbour valid
    ht = mask_ref[2:3, :]                 # height mask: row-1 neighbour valid
    hb = mask_ref[3:4, :]                 # height mask: row+1 neighbour valid

    def pcol(name, i=0):
        o, _sz = off[name]
        return par[:, o + i:o + i + 1]    # (C_pad, 1) per-row constant, broadcasts over lanes

    def silu(v, exact=False):
        den = 1.0 + jnp.exp(-v)
        if exact:
            return v / den                # final stage: exact sigmoid (accuracy)
        return v * pl.reciprocal(den, approx=True)   # EUP slot, frees the VALU

    def dwconv3(y, name):
        # depthwise 3x3 'same': 8 lane rolls + factored border masks (4 mask multiplies total).
        # Column-shifted, width-masked variants are shared by all 3 row offsets.
        cneg = wl * pltpu.roll(y, 1, axis=1)          # neighbour at col-1
        cpos = wr * pltpu.roll(y, HW - 1, axis=1)     # neighbour at col+1
        cols = (cneg, y, cpos)

        def row(di):                                  # di in {-1, 0, +1}: row offset
            s = (-di * W) % HW
            acc = None
            for j in range(3):                        # j = dj + 1
                v = cols[j] if s == 0 else pltpu.roll(cols[j], s, axis=1)
                term = v * pcol(name, (di + 1) * 3 + j)   # BN-folded per-channel tap
                acc = term if acc is None else acc + term
            return acc

        return ht * row(-1) + row(0) + hb * row(+1)

    def chan_mix(y, m_ref):
        # 1x1 conv == dense (C_out, C_in) x (C_in, HW) contraction on the MXU.
        w = m_ref[...]
        if mxu_bf16:                                  # full-rate MXU at production C
            return jnp.dot(w.astype(jnp.bfloat16), y.astype(jnp.bfloat16),
                           preferred_element_type=jnp.float32)
        return jnp.dot(w, y, preferred_element_type=jnp.float32)

    y = silu(dwconv3(x, "dw1_tap") + pcol("dw1_b"))                            # Conv(c1,c1,3,g=c1)
    y = silu(chan_mix(y, m1_ref) + pcol("pw1_b"))                              # Conv(c1,2c_,1)
    y = silu(dwconv3(y, "rep1_tap") + y * pcol("rep1_m") + pcol("rep1_b"))     # RepConv(2c_,2c_,3,g)
    y = silu(chan_mix(y, m2_ref) + pcol("pw2_b"))                              # Conv(2c_,c2,1)
    y = silu(dwconv3(y, "rep2_tap") + y * pcol("rep2_m") + pcol("rep2_b"))     # RepConv(c2,c2,3,g)
    y = silu(y * pcol("bn_s") + pcol("bn_b"), exact=True)                      # BatchNorm2d + SiLU
    if add:
        y = y + x                                                              # residual (c1 == c2)
    o_ref[0] = y.astype(o_ref.dtype)


# --------------------------- host-side constant folding / packing ----------------------------
def _build_param_slab(p, C, C_pad):
    """Fold eval-mode BN scales into the depthwise taps and pack all per-channel scalars into
    one tiny (C_pad, 36) f32 slab (single, grid-constant DMA)."""
    def col(v):
        return jnp.asarray(v, jnp.float32).reshape(C, 1)

    def dw_cols(w33, s):                                # (3,3,C),(C,) -> (C, 9), BN scale folded
        return (w33 * s[None, None, :]).reshape(9, C).T

    pieces = {
        "dw1_tap": dw_cols(p["dw1_w"], p["dw1_s"]), "dw1_b": col(p["dw1_b"]),
        "pw1_b": col(p["pw1_b"]),
        "rep1_tap": dw_cols(p["r1w3"], p["r1s3"]),
        "rep1_m": col(p["r1w1"] * p["r1s1"]), "rep1_b": col(p["r1b3"] + p["r1b1"]),
        "pw2_b": col(p["pw2_b"]),
        "rep2_tap": dw_cols(p["r2w3"], p["r2s3"]),
        "rep2_m": col(p["r2w1"] * p["r2s1"]), "rep2_b": col(p["r2b3"] + p["r2b1"]),
        "bn_s": col(p["bn_s"]), "bn_b": col(p["bn_b"]),
    }
    slab = jnp.concatenate([pieces[n] for n, _ in _SEGS], axis=1).astype(jnp.float32)
    return jnp.pad(slab, ((0, C_pad - C), (0, 0)))      # padded channels -> all-zero params


def _build_mixT(w, s, C_pad):
    """1x1 conv weight (C_in, C_out) + output BN scale -> (C_pad, C_pad) matrix (out, in)."""
    m = (w * s[None, :]).T                              # (C_out, C_in), BN folded
    return jnp.pad(m, ((0, C_pad - m.shape[0]), (0, C_pad - m.shape[1]))).astype(jnp.float32)


def _build_masks(H, W):
    """Host-precomputed 3x3 border masks on the flattened H*W lane axis (8 rows, 4 used)."""
    HW = H * W
    wi = jnp.arange(HW) % W
    hi = jnp.arange(HW) // W
    rows = [wi >= 1, wi <= W - 2, hi >= 1, hi <= H - 2]
    rows += [jnp.zeros((HW,), bool)] * 4                # pad to 8 sublanes
    return jnp.stack(rows).astype(jnp.float32)


def repcib_forward(x_nchw, params, *, add):
    """x_nchw: (N, c1, H, W) like PyTorch.  Returns (N, c2, H, W)."""
    N, c1, H, W = x_nchw.shape
    cm = params["pw1_w"].shape[1]
    c2 = params["pw2_w"].shape[1]
    # With e=0.5 + residual shortcut, RepCIB always has c1 == 2*c_ == c2.
    assert c1 == cm == c2, "kernel assumes equal channel counts along the pipeline"
    C, HW = c1, H * W
    C_pad = max(8, ((C + 7) // 8) * 8)                  # sublane-align (no-op at production C)

    x = x_nchw.reshape(N, C, HW).astype(jnp.float32)    # NCHW -> (N, C, H*W): pure reshape
    if C_pad != C:
        x = jnp.pad(x, ((0, 0), (0, C_pad - C), (0, 0)))

    par = _build_param_slab(params, C, C_pad)
    masks = _build_masks(H, W)
    mix1 = _build_mixT(params["pw1_w"], params["pw1_s"], C_pad)
    mix2 = _build_mixT(params["pw2_w"], params["pw2_s"], C_pad)
    NPAR = par.shape[1]

    mxu_bf16 = C >= 64                                  # bf16 MXU inputs only at non-trivial C
    kernel = functools.partial(repcib_kernel, W=W, add=add, mxu_bf16=mxu_bf16)

    # VMEM budget: double-buffered in/out tiles + headroom for the dwconv temporaries + weights.
    tile_bytes = C_pad * HW * 4
    weight_bytes = 2 * (2 * C_pad * C_pad * 4 + par.size * 4 + masks.size * 4)
    vmem_est = 12 * tile_bytes + weight_bytes + (2 << 20)
    vmem_limit = int(min(max(vmem_est, 32 << 20), 56 << 20))   # stay under v7x's 64 MiB physical

    out = pl.pallas_call(
        kernel,
        out_shape=jax.ShapeDtypeStruct((N, C_pad, HW), jnp.float32),
        grid_spec=pltpu.PrefetchScalarGridSpec(
            num_scalar_prefetch=0,
            grid=(N,),                                  # one image's channels per grid step
            in_specs=[
                pl.BlockSpec((1, C_pad, HW), lambda n: (n, 0, 0)),   # activations: per-image tile
                pl.BlockSpec((C_pad, NPAR), lambda n: (0, 0)),       # scalar slab: grid-constant
                pl.BlockSpec((8, HW), lambda n: (0, 0)),             # border masks: grid-constant
                pl.BlockSpec((C_pad, C_pad), lambda n: (0, 0)),      # mix1 weights: grid-constant
                pl.BlockSpec((C_pad, C_pad), lambda n: (0, 0)),      # mix2 weights: grid-constant
            ],
            out_specs=pl.BlockSpec((1, C_pad, HW), lambda n: (n, 0, 0)),
        ),
        compiler_params=pltpu.CompilerParams(
            dimension_semantics=("parallel",),          # split batch across v7x TensorCores
            vmem_limit_bytes=vmem_limit,
        ),
    )(x, par, masks, mix1, mix2)

    return out[:, :C, :].reshape(N, C, H, W).astype(x_nchw.dtype)


# -------------------------------- synthetic params + reference -------------------------------
def make_params(key, c1, c2, e=0.5):
    """Deterministic synthetic parameters; eval-mode BN folded to per-channel (scale, bias)."""
    c_ = int(c2 * e)
    cm = 2 * c_
    keys = iter(jax.random.split(key, 64))

    def nrm(shape, scale=0.5):
        return scale * jax.random.normal(next(keys), shape, jnp.float32)

    def bn(c, eps=1e-5):
        gamma = 1.0 + 0.1 * jax.random.normal(next(keys), (c,), jnp.float32)
        beta = 0.1 * jax.random.normal(next(keys), (c,), jnp.float32)
        mean = 0.1 * jax.random.normal(next(keys), (c,), jnp.float32)
        var = jnp.abs(1.0 + 0.1 * jax.random.normal(next(keys), (c,), jnp.float32))
        s = gamma / jnp.sqrt(var + eps)
        return s, beta - mean * s

    p = {}
    p["dw1_w"] = nrm((3, 3, c1)); p["dw1_s"], p["dw1_b"] = bn(c1)
    p["pw1_w"] = nrm((c1, cm));   p["pw1_s"], p["pw1_b"] = bn(cm)
    p["r1w3"] = nrm((3, 3, cm));  p["r1s3"], p["r1b3"] = bn(cm)
    p["r1w1"] = nrm((cm,));       p["r1s1"], p["r1b1"] = bn(cm)
    p["pw2_w"] = nrm((cm, c2));   p["pw2_s"], p["pw2_b"] = bn(c2)
    p["r2w3"] = nrm((3, 3, c2));  p["r2s3"], p["r2b3"] = bn(c2)
    p["r2w1"] = nrm((c2,));       p["r2s1"], p["r2b1"] = bn(c2)
    p["bn_s"], p["bn_b"] = bn(c2)
    return p


def ref_forward(x, p, add):
    """Pure-JAX (XLA conv) reference in the same NCHW layout."""
    def bc(v):
        return v.reshape(1, -1, 1, 1)

    def dw3(x, w):
        C = x.shape[1]
        return lax.conv_general_dilated(
            x, w.reshape(3, 3, 1, C), (1, 1), "SAME",
            dimension_numbers=("NCHW", "HWIO", "NCHW"), feature_group_count=C)

    def pw(x, w):
        return jnp.einsum("nchw,cd->ndhw", x, w)

    y = jax.nn.silu(dw3(x, p["dw1_w"]) * bc(p["dw1_s"]) + bc(p["dw1_b"]))
    y = jax.nn.silu(pw(y, p["pw1_w"]) * bc(p["pw1_s"]) + bc(p["pw1_b"]))
    y = jax.nn.silu(dw3(y, p["r1w3"]) * bc(p["r1s3"]) + bc(p["r1b3"])
                    + y * bc(p["r1w1"] * p["r1s1"]) + bc(p["r1b1"]))
    y = jax.nn.silu(pw(y, p["pw2_w"]) * bc(p["pw2_s"]) + bc(p["pw2_b"]))
    y = jax.nn.silu(dw3(y, p["r2w3"]) * bc(p["r2s3"]) + bc(p["r2b3"])
                    + y * bc(p["r2w1"] * p["r2s1"]) + bc(p["r2b1"]))
    y = jax.nn.silu(y * bc(p["bn_s"]) + bc(p["bn_b"]))
    return x + y if add else y


if __name__ == "__main__":
    key = jax.random.PRNGKey(0)
    kx, kp = jax.random.split(key)

    # RepCIB(c1=4, c2=4, shortcut=True, e=0.5) on a [2, 4, 16, 16] NCHW input (PyTorch layout).
    N, c1, c2, H, W = 2, 4, 4, 16, 16
    shortcut = True
    add = shortcut and c1 == c2

    x = jax.random.normal(kx, (N, c1, H, W), jnp.float32)
    params = make_params(kp, c1, c2, e=0.5)

    out = jax.block_until_ready(repcib_forward(x, params, add=add))
    ref = ref_forward(x, params, add)

    assert out.shape == (N, c2, H, W) and out.dtype == jnp.float32
    err = float(jnp.max(jnp.abs(out - ref)))
    # tolerance covers the EUP approx-reciprocal used in the 5 intermediate SiLU stages
    assert jnp.allclose(out, ref, atol=1e-2, rtol=1e-2), err
    print("KERNEL_OK")
</pallas_src>

<mosaic_0001>
module attributes {stable_mosaic.version = 11 : i64} {
  func.func @repcib_kernel(%arg0: i32, %arg1: memref<1x8x256xf32, #tpu.memory_space<vmem>>, %arg2: memref<8x36xf32, #tpu.memory_space<vmem>>, %arg3: memref<8x256xf32, #tpu.memory_space<vmem>>, %arg4: memref<8x8xf32, #tpu.memory_space<vmem>>, %arg5: memref<8x8xf32, #tpu.memory_space<vmem>>, %arg6: memref<1x8x256xf32, #tpu.memory_space<vmem>>) attributes {dimension_semantics = [#tpu.dimension_semantics<parallel>], iteration_bounds = array<i64: 2>, scalar_prefetch = 0 : i64, scratch_operands = 0 : i64, tpu.core_type = #tpu.core_type<tc>, window_params = [{transform_indices = @transform_0, window_bounds = array<i64: 1, 8, 256>}, {pipeline_mode = #tpu.pipeline_mode<synchronous>, transform_indices = @transform_1, window_bounds = array<i64: 8, 36>}, {pipeline_mode = #tpu.pipeline_mode<synchronous>, transform_indices = @transform_2, window_bounds = array<i64: 8, 256>}, {pipeline_mode = #tpu.pipeline_mode<synchronous>, transform_indices = @transform_3, window_bounds = array<i64: 8, 8>}, {pipeline_mode = #tpu.pipeline_mode<synchronous>, transform_indices = @transform_4, window_bounds = array<i64: 8, 8>}, {transform_indices = @transform_5, window_bounds = array<i64: 1, 8, 256>}]} {
    %c0 = arith.constant 0 : index
    %c0_0 = arith.constant 0 : index
    %c0_1 = arith.constant 0 : index
    %0 = vector.load %arg1[%c0, %c0_0, %c0_1] : memref<1x8x256xf32, #tpu.memory_space<vmem>>, vector<1x8x256xf32>
    %1 = vector.shape_cast %0 : vector<1x8x256xf32> to vector<8x256xf32>
    %c0_2 = arith.constant 0 : index
    %c0_3 = arith.constant 0 : index
    %2 = vector.load %arg2[%c0_2, %c0_3] : memref<8x36xf32, #tpu.memory_space<vmem>>, vector<8x36xf32>
    %c0_4 = arith.constant 0 : index
    %c0_5 = arith.constant 0 : index
    %3 = vector.load %arg3[%c0_4, %c0_5] : memref<8x256xf32, #tpu.memory_space<vmem>>, vector<1x256xf32>
    %c1 = arith.constant 1 : index
    %c0_6 = arith.constant 0 : index
    %4 = vector.load %arg3[%c1, %c0_6] : memref<8x256xf32, #tpu.memory_space<vmem>>, vector<1x256xf32>
    %c2 = arith.constant 2 : index
    %c0_7 = arith.constant 0 : index
    %5 = vector.load %arg3[%c2, %c0_7] : memref<8x256xf32, #tpu.memory_space<vmem>>, vector<1x256xf32>
    %c3 = arith.constant 3 : index
    %c0_8 = arith.constant 0 : index
    %6 = vector.load %arg3[%c3, %c0_8] : memref<8x256xf32, #tpu.memory_space<vmem>>, vector<1x256xf32>
    %c1_i32 = arith.constant 1 : i32
    %7 = tpu.dynamic_rotate %1 by %c1_i32 dim 1 : vector<8x256xf32>, i32 -> vector<8x256xf32>
    %8 = vector.broadcast %3 : vector<1x256xf32> to vector<8x256xf32>
    %9 = arith.mulf %8, %7 : vector<8x256xf32>
    %c255_i32 = arith.constant 255 : i32
    %10 = tpu.dynamic_rotate %1 by %c255_i32 dim 1 : vector<8x256xf32>, i32 -> vector<8x256xf32>
    %11 = vector.broadcast %4 : vector<1x256xf32> to vector<8x256xf32>
    %12 = arith.mulf %11, %10 : vector<8x256xf32>
    %c16_i32 = arith.constant 16 : i32
    %13 = tpu.dynamic_rotate %9 by %c16_i32 dim 1 : vector<8x256xf32>, i32 -> vector<8x256xf32>
    %14 = vector.extract_strided_slice %2 {offsets = [0, 0], sizes = [8, 1], strides = [1, 1]} : vector<8x36xf32> to vector<8x1xf32>
    %15 = vector.broadcast %14 : vector<8x1xf32> to vector<8x256xf32>
    %16 = arith.mulf %13, %15 : vector<8x256xf32>
    %c16_i32_9 = arith.constant 16 : i32
    %17 = tpu.dynamic_rotate %1 by %c16_i32_9 dim 1 : vector<8x256xf32>, i32 -> vector<8x256xf32>
    %18 = vector.extract_strided_slice %2 {offsets = [0, 1], sizes = [8, 1], strides = [1, 1]} : vector<8x36xf32> to vector<8x1xf32>
    %19 = vector.broadcast %18 : vector<8x1xf32> to vector<8x256xf32>
    %20 = arith.mulf %17, %19 : vector<8x256xf32>
    %21 = arith.addf %16, %20 : vector<8x256xf32>
    %c16_i32_10 = arith.constant 16 : i32
    %22 = tpu.dynamic_rotate %12 by %c16_i32_10 dim 1 : vector<8x256xf32>, i32 -> vector<8x256xf32>
    %23 = vector.extract_strided_slice %2 {offsets = [0, 2], sizes = [8, 1], strides = [1, 1]} : vector<8x36xf32> to vector<8x1xf32>
    %24 = vector.broadcast %23 : vector<8x1xf32> to vector<8x256xf32>
    %25 = arith.mulf %22, %24 : vector<8x256xf32>
    %26 = arith.addf %21, %25 : vector<8x256xf32>
    %27 = vector.broadcast %5 : vector<1x256xf32> to vector<8x256xf32>
    %28 = arith.mulf %27, %26 : vector<8x256xf32>
    %29 = vector.extract_strided_slice %2 {offsets = [0, 3], sizes = [8, 1], strides = [1, 1]} : vector<8x36xf32> to vector<8x1xf32>
    %30 = vector.broadcast %29 : vector<8x1xf32> to vector<8x256xf32>
    %31 = arith.mulf %9, %30 : vector<8x256xf32>
    %32 = vector.extract_strided_slice %2 {offsets = [0, 4], sizes = [8, 1], strides = [1, 1]} : vector<8x36xf32> to vector<8x1xf32>
    %33 = vector.broadcast %32 : vector<8x1xf32> to vector<8x256xf32>
    %34 = arith.mulf %1, %33 : vector<8x256xf32>
    %35 = arith.addf %31, %34 : vector<8x256xf32>
    %36 = vector.extract_strided_slice %2 {offsets = [0, 5], sizes = [8, 1], strides = [1, 1]} : vector<8x36xf32> to vector<8x1xf32>
    %37 = vector.broadcast %36 : vector<8x1xf32> to vector<8x256xf32>
    %38 = arith.mulf %12, %37 : vector<8x256xf32>
    %39 = arith.addf %35, %38 : vector<8x256xf32>
    %40 = arith.addf %28, %39 : vector<8x256xf32>
    %c240_i32 = arith.constant 240 : i32
    %41 = tpu.dynamic_rotate %9 by %c240_i32 dim 1 : vector<8x256xf32>, i32 -> vector<8x256xf32>
    %42 = vector.extract_strided_slice %2 {offsets = [0, 6], sizes = [8, 1], strides = [1, 1]} : vector<8x36xf32> to vector<8x1xf32>
    %43 = vector.broadcast %42 : vector<8x1xf32> to vector<8x256xf32>
    %44 = arith.mulf %41, %43 : vector<8x256xf32>
    %c240_i32_11 = arith.constant 240 : i32
    %45 = tpu.dynamic_rotate %1 by %c240_i32_11 dim 1 : vector<8x256xf32>, i32 -> vector<8x256xf32>
    %46 = vector.extract_strided_slice %2 {offsets = [0, 7], sizes = [8, 1], strides = [1, 1]} : vector<8x36xf32> to vector<8x1xf32>
    %47 = vector.broadcast %46 : vector<8x1xf32> to vector<8x256xf32>
    %48 = arith.mulf %45, %47 : vector<8x256xf32>
    %49 = arith.addf %44, %48 : vector<8x256xf32>
    %c240_i32_12 = arith.constant 240 : i32
    %50 = tpu.dynamic_rotate %12 by %c240_i32_12 dim 1 : vector<8x256xf32>, i32 -> vector<8x256xf32>
    %51 = vector.extract_strided_slice %2 {offsets = [0, 8], sizes = [8, 1], strides = [1, 1]} : vector<8x36xf32> to vector<8x1xf32>
    %52 = vector.broadcast %51 : vector<8x1xf32> to vector<8x256xf32>
    %53 = arith.mulf %50, %52 : vector<8x256xf32>
    %54 = arith.addf %49, %53 : vector<8x256xf32>
    %55 = vector.broadcast %6 : vector<1x256xf32> to vector<8x256xf32>
    %56 = arith.mulf %55, %54 : vector<8x256xf32>
    %57 = arith.addf %40, %56 : vector<8x256xf32>
    %58 = vector.extract_strided_slice %2 {offsets = [0, 9], sizes = [8, 1], strides = [1, 1]} : vector<8x36xf32> to vector<8x1xf32>
    %59 = vector.broadcast %58 : vector<8x1xf32> to vector<8x256xf32>
    %60 = arith.addf %57, %59 : vector<8x256xf32>
    %cst = arith.constant 0.000000e+00 : f32
    %61 = vector.broadcast %cst : f32 to vector<8x256xf32>
    %62 = arith.subf %61, %60 : vector<8x256xf32>
    %63 = math.exp %62 : vector<8x256xf32>
    %cst_13 = arith.constant 1.000000e+00 : f32
    %64 = vector.broadcast %cst_13 : f32 to vector<8x256xf32>
    %65 = arith.addf %64, %63 : vector<8x256xf32>
    %66 = tpu.reciprocal %65 {approx = true} : vector<8x256xf32> -> vector<8x256xf32>
    %67 = arith.mulf %60, %66 : vector<8x256xf32>
    %c0_14 = arith.constant 0 : index
    %c0_15 = arith.constant 0 : index
    %68 = vector.load %arg4[%c0_14, %c0_15] : memref<8x8xf32, #tpu.memory_space<vmem>>, vector<8x8xf32>
    %cst_16 = arith.constant dense<0.000000e+00> : vector<8x256xf32>
    %69 = tpu.matmul %68, %67, %cst_16 {dimension_numbers = #tpu.dot_dimension_numbers<[1], [0], [0], [1], [0, 0, 1, 1], [], []>} : vector<8x8xf32>, vector<8x256xf32>, vector<8x256xf32> -> vector<8x256xf32>
    %70 = vector.extract_strided_slice %2 {offsets = [0, 10], sizes = [8, 1], strides = [1, 1]} : vector<8x36xf32> to vector<8x1xf32>
    %71 = vector.broadcast %70 : vector<8x1xf32> to vector<8x256xf32>
    %72 = arith.addf %69, %71 : vector<8x256xf32>
    %cst_17 = arith.constant 0.000000e+00 : f32
    %73 = vector.broadcast %cst_17 : f32 to vector<8x256xf32>
    %74 = arith.subf %73, %72 : vector<8x256xf32>
    %75 = math.exp %74 : vector<8x256xf32>
    %cst_18 = arith.constant 1.000000e+00 : f32
    %76 = vector.broadcast %cst_18 : f32 to vector<8x256xf32>
    %77 = arith.addf %76, %75 : vector<8x256xf32>
    %78 = tpu.reciprocal %77 {approx = true} : vector<8x256xf32> -> vector<8x256xf32>
    %79 = arith.mulf %72, %78 : vector<8x256xf32>
    %c1_i32_19 = arith.constant 1 : i32
    %80 = tpu.dynamic_rotate %79 by %c1_i32_19 dim 1 : vector<8x256xf32>, i32 -> vector<8x256xf32>
    %81 = vector.broadcast %3 : vector<1x256xf32> to vector<8x256xf32>
    %82 = arith.mulf %81, %80 : vector<8x256xf32>
    %c255_i32_20 = arith.constant 255 : i32
    %83 = tpu.dynamic_rotate %79 by %c255_i32_20 dim 1 : vector<8x256xf32>, i32 -> vector<8x256xf32>
    %84 = vector.broadcast %4 : vector<1x256xf32> to vector<8x256xf32>
    %85 = arith.mulf %84, %83 : vector<8x256xf32>
    %c16_i32_21 = arith.constant 16 : i32
    %86 = tpu.dynamic_rotate %82 by %c16_i32_21 dim 1 : vector<8x256xf32>, i32 -> vector<8x256xf32>
    %87 = vector.extract_strided_slice %2 {offsets = [0, 11], sizes = [8, 1], strides = [1, 1]} : vector<8x36xf32> to vector<8x1xf32>
    %88 = vector.broadcast %87 : vector<8x1xf32> to vector<8x256xf32>
    %89 = arith.mulf %86, %88 : vector<8x256xf32>
    %c16_i32_22 = arith.constant 16 : i32
    %90 = tpu.dynamic_rotate %79 by %c16_i32_22 dim 1 : vector<8x256xf32>, i32 -> vector<8x256xf32>
    %91 = vector.extract_strided_slice %2 {offsets = [0, 12], sizes = [8, 1], strides = [1, 1]} : vector<8x36xf32> to vector<8x1xf32>
    %92 = vector.broadcast %91 : vector<8x1xf32> to vector<8x256xf32>
    %93 = arith.mulf %90, %92 : vector<8x256xf32>
    %94 = arith.addf %89, %93 : vector<8x256xf32>
    %c16_i32_23 = arith.constant 16 : i32
    %95 = tpu.dynamic_rotate %85 by %c16_i32_23 dim 1 : vector<8x256xf32>, i32 -> vector<8x256xf32>
    %96 = vector.extract_strided_slice %2 {offsets = [0, 13], sizes = [8, 1], strides = [1, 1]} : vector<8x36xf32> to vector<8x1xf32>
    %97 = vector.broadcast %96 : vector<8x1xf32> to vector<8x256xf32>
    %98 = arith.mulf %95, %97 : vector<8x256xf32>
    %99 = arith.addf %94, %98 : vector<8x256xf32>
    %100 = vector.broadcast %5 : vector<1x256xf32> to vector<8x256xf32>
    %101 = arith.mulf %100, %99 : vector<8x256xf32>
    %102 = vector.extract_strided_slice %2 {offsets = [0, 14], sizes = [8, 1], strides = [1, 1]} : vector<8x36xf32> to vector<8x1xf32>
    %103 = vector.broadcast %102 : vector<8x1xf32> to vector<8x256xf32>
    %104 = arith.mulf %82, %103 : vector<8x256xf32>
    %105 = vector.extract_strided_slice %2 {offsets = [0, 15], sizes = [8, 1], strides = [1, 1]} : vector<8x36xf32> to vector<8x1xf32>
    %106 = vector.broadcast %105 : vector<8x1xf32> to vector<8x256xf32>
    %107 = arith.mulf %79, %106 : vector<8x256xf32>
    %108 = arith.addf %104, %107 : vector<8x256xf32>
    %109 = vector.extract_strided_slice %2 {offsets = [0, 16], sizes = [8, 1], strides = [1, 1]} : vector<8x36xf32> to vector<8x1xf32>
    %110 = vector.broadcast %109 : vector<8x1xf32> to vector<8x256xf32>
    %111 = arith.mulf %85, %110 : vector<8x256xf32>
    %112 = arith.addf %108, %111 : vector<8x256xf32>
    %113 = arith.addf %101, %112 : vector<8x256xf32>
    %c240_i32_24 = arith.constant 240 : i32
    %114 = tpu.dynamic_rotate %82 by %c240_i32_24 dim 1 : vector<8x256xf32>, i32 -> vector<8x256xf32>
    %115 = vector.extract_strided_slice %2 {offsets = [0, 17], sizes = [8, 1], strides = [1, 1]} : vector<8x36xf32> to vector<8x1xf32>
    %116 = vector.broadcast %115 : vector<8x1xf32> to vector<8x256xf32>
    %117 = arith.mulf %114, %116 : vector<8x256xf32>
    %c240_i32_25 = arith.constant 240 : i32
    %118 = tpu.dynamic_rotate %79 by %c240_i32_25 dim 1 : vector<8x256xf32>, i32 -> vector<8x256xf32>
    %119 = vector.extract_strided_slice %2 {offsets = [0, 18], sizes = [8, 1], strides = [1, 1]} : vector<8x36xf32> to vector<8x1xf32>
    %120 = vector.broadcast %119 : vector<8x1xf32> to vector<8x256xf32>
    %121 = arith.mulf %118, %120 : vector<8x256xf32>
    %122 = arith.addf %117, %121 : vector<8x256xf32>
    %c240_i32_26 = arith.constant 240 : i32
    %123 = tpu.dynamic_rotate %85 by %c240_i32_26 dim 1 : vector<8x256xf32>, i32 -> vector<8x256xf32>
    %124 = vector.extract_strided_slice %2 {offsets = [0, 19], sizes = [8, 1], strides = [1, 1]} : vector<8x36xf32> to vector<8x1xf32>
    %125 = vector.broadcast %124 : vector<8x1xf32> to vector<8x256xf32>
    %126 = arith.mulf %123, %125 : vector<8x256xf32>
    %127 = arith.addf %122, %126 : vector<8x256xf32>
    %128 = vector.broadcast %6 : vector<1x256xf32> to vector<8x256xf32>
    %129 = arith.mulf %128, %127 : vector<8x256xf32>
    %130 = arith.addf %113, %129 : vector<8x256xf32>
    %131 = vector.extract_strided_slice %2 {offsets = [0, 20], sizes = [8, 1], strides = [1, 1]} : vector<8x36xf32> to vector<8x1xf32>
    %132 = vector.broadcast %131 : vector<8x1xf32> to vector<8x256xf32>
    %133 = arith.mulf %79, %132 : vector<8x256xf32>
    %134 = arith.addf %130, %133 : vector<8x256xf32>
    %135 = vector.extract_strided_slice %2 {offsets = [0, 21], sizes = [8, 1], strides = [1, 1]} : vector<8x36xf32> to vector<8x1xf32>
    %136 = vector.broadcast %135 : vector<8x1xf32> to vector<8x256xf32>
    %137 = arith.addf %134, %136 : vector<8x256xf32>
    %cst_27 = arith.constant 0.000000e+00 : f32
    %138 = vector.broadcast %cst_27 : f32 to vector<8x256xf32>
    %139 = arith.subf %138, %137 : vector<8x256xf32>
    %140 = math.exp %139 : vector<8x256xf32>
    %cst_28 = arith.constant 1.000000e+00 : f32
    %141 = vector.broadcast %cst_28 : f32 to vector<8x256xf32>
    %142 = arith.addf %141, %140 : vector<8x256xf32>
    %143 = tpu.reciprocal %142 {approx = true} : vector<8x256xf32> -> vector<8x256xf32>
    %144 = arith.mulf %137, %143 : vector<8x256xf32>
    %c0_29 = arith.constant 0 : index
    %c0_30 = arith.constant 0 : index
    %145 = vector.load %arg5[%c0_29, %c0_30] : memref<8x8xf32, #tpu.memory_space<vmem>>, vector<8x8xf32>
    %cst_31 = arith.constant dense<0.000000e+00> : vector<8x256xf32>
    %146 = tpu.matmul %145, %144, %cst_31 {dimension_numbers = #tpu.dot_dimension_numbers<[1], [0], [0], [1], [0, 0, 1, 1], [], []>} : vector<8x8xf32>, vector<8x256xf32>, vector<8x256xf32> -> vector<8x256xf32>
    %147 = vector.extract_strided_slice %2 {offsets = [0, 22], sizes = [8, 1], strides = [1, 1]} : vector<8x36xf32> to vector<8x1xf32>
    %148 = vector.broadcast %147 : vector<8x1xf32> to vector<8x256xf32>
    %149 = arith.addf %146, %148 : vector<8x256xf32>
    %cst_32 = arith.constant 0.000000e+00 : f32
    %150 = vector.broadcast %cst_32 : f32 to vector<8x256xf32>
    %151 = arith.subf %150, %149 : vector<8x256xf32>
    %152 = math.exp %151 : vector<8x256xf32>
    %cst_33 = arith.constant 1.000000e+00 : f32
    %153 = vector.broadcast %cst_33 : f32 to vector<8x256xf32>
    %154 = arith.addf %153, %152 : vector<8x256xf32>
    %155 = tpu.reciprocal %154 {approx = true} : vector<8x256xf32> -> vector<8x256xf32>
    %156 = arith.mulf %149, %155 : vector<8x256xf32>
    %c1_i32_34 = arith.constant 1 : i32
    %157 = tpu.dynamic_rotate %156 by %c1_i32_34 dim 1 : vector<8x256xf32>, i32 -> vector<8x256xf32>
    %158 = vector.broadcast %3 : vector<1x256xf32> to vector<8x256xf32>
    %159 = arith.mulf %158, %157 : vector<8x256xf32>
    %c255_i32_35 = arith.constant 255 : i32
    %160 = tpu.dynamic_rotate %156 by %c255_i32_35 dim 1 : vector<8x256xf32>, i32 -> vector<8x256xf32>
    %161 = vector.broadcast %4 : vector<1x256xf32> to vector<8x256xf32>
    %162 = arith.mulf %161, %160 : vector<8x256xf32>
    %c16_i32_36 = arith.constant 16 : i32
    %163 = tpu.dynamic_rotate %159 by %c16_i32_36 dim 1 : vector<8x256xf32>, i32 -> vector<8x256xf32>
    %164 = vector.extract_strided_slice %2 {offsets = [0, 23], sizes = [8, 1], strides = [1, 1]} : vector<8x36xf32> to vector<8x1xf32>
    %165 = vector.broadcast %164 : vector<8x1xf32> to vector<8x256xf32>
    %166 = arith.mulf %163, %165 : vector<8x256xf32>
    %c16_i32_37 = arith.constant 16 : i32
    %167 = tpu.dynamic_rotate %156 by %c16_i32_37 dim 1 : vector<8x256xf32>, i32 -> vector<8x256xf32>
    %168 = vector.extract_strided_slice %2 {offsets = [0, 24], sizes = [8, 1], strides = [1, 1]} : vector<8x36xf32> to vector<8x1xf32>
    %169 = vector.broadcast %168 : vector<8x1xf32> to vector<8x256xf32>
    %170 = arith.mulf %167, %169 : vector<8x256xf32>
    %171 = arith.addf %166, %170 : vector<8x256xf32>
    %c16_i32_38 = arith.constant 16 : i32
    %172 = tpu.dynamic_rotate %162 by %c16_i32_38 dim 1 : vector<8x256xf32>, i32 -> vector<8x256xf32>
    %173 = vector.extract_strided_slice %2 {offsets = [0, 25], sizes = [8, 1], strides = [1, 1]} : vector<8x36xf32> to vector<8x1xf32>
    %174 = vector.broadcast %173 : vector<8x1xf32> to vector<8x256xf32>
    %175 = arith.mulf %172, %174 : vector<8x256xf32>
    %176 = arith.addf %171, %175 : vector<8x256xf32>
    %177 = vector.broadcast %5 : vector<1x256xf32> to vector<8x256xf32>
    %178 = arith.mulf %177, %176 : vector<8x256xf32>
    %179 = vector.extract_strided_slice %2 {offsets = [0, 26], sizes = [8, 1], strides = [1, 1]} : vector<8x36xf32> to vector<8x1xf32>
    %180 = vector.broadcast %179 : vector<8x1xf32> to vector<8x256xf32>
    %181 = arith.mulf %159, %180 : vector<8x256xf32>
    %182 = vector.extract_strided_slice %2 {offsets = [0, 27], sizes = [8, 1], strides = [1, 1]} : vector<8x36xf32> to vector<8x1xf32>
    %183 = vector.broadcast %182 : vector<8x1xf32> to vector<8x256xf32>
    %184 = arith.mulf %156, %183 : vector<8x256xf32>
    %185 = arith.addf %181, %184 : vector<8x256xf32>
    %186 = vector.extract_strided_slice %2 {offsets = [0, 28], sizes = [8, 1], strides = [1, 1]} : vector<8x36xf32> to vector<8x1xf32>
    %187 = vector.broadcast %186 : vector<8x1xf32> to vector<8x256xf32>
    %188 = arith.mulf %162, %187 : vector<8x256xf32>
    %189 = arith.addf %185, %188 : vector<8x256xf32>
    %190 = arith.addf %178, %189 : vector<8x256xf32>
    %c240_i32_39 = arith.constant 240 : i32
    %191 = tpu.dynamic_rotate %159 by %c240_i32_39 dim 1 : vector<8x256xf32>, i32 -> vector<8x256xf32>
    %192 = vector.extract_strided_slice %2 {offsets = [0, 29], sizes = [8, 1], strides = [1, 1]} : vector<8x36xf32> to vector<8x1xf32>
    %193 = vector.broadcast %192 : vector<8x1xf32> to vector<8x256xf32>
    %194 = arith.mulf %191, %193 : vector<8x256xf32>
    %c240_i32_40 = arith.constant 240 : i32
    %195 = tpu.dynamic_rotate %156 by %c240_i32_40 dim 1 : vector<8x256xf32>, i32 -> vector<8x256xf32>
    %196 = vector.extract_strided_slice %2 {offsets = [0, 30], sizes = [8, 1], strides = [1, 1]} : vector<8x36xf32> to vector<8x1xf32>
    %197 = vector.broadcast %196 : vector<8x1xf32> to vector<8x256xf32>
    %198 = arith.mulf %195, %197 : vector<8x256xf32>
    %199 = arith.addf %194, %198 : vector<8x256xf32>
    %c240_i32_41 = arith.constant 240 : i32
    %200 = tpu.dynamic_rotate %162 by %c240_i32_41 dim 1 : vector<8x256xf32>, i32 -> vector<8x256xf32>
    %201 = vector.extract_strided_slice %2 {offsets = [0, 31], sizes = [8, 1], strides = [1, 1]} : vector<8x36xf32> to vector<8x1xf32>
    %202 = vector.broadcast %201 : vector<8x1xf32> to vector<8x256xf32>
    %203 = arith.mulf %200, %202 : vector<8x256xf32>
    %204 = arith.addf %199, %203 : vector<8x256xf32>
    %205 = vector.broadcast %6 : vector<1x256xf32> to vector<8x256xf32>
    %206 = arith.mulf %205, %204 : vector<8x256xf32>
    %207 = arith.addf %190, %206 : vector<8x256xf32>
    %208 = vector.extract_strided_slice %2 {offsets = [0, 32], sizes = [8, 1], strides = [1, 1]} : vector<8x36xf32> to vector<8x1xf32>
    %209 = vector.broadcast %208 : vector<8x1xf32> to vector<8x256xf32>
    %210 = arith.mulf %156, %209 : vector<8x256xf32>
    %211 = arith.addf %207, %210 : vector<8x256xf32>
    %212 = vector.extract_strided_slice %2 {offsets = [0, 33], sizes = [8, 1], strides = [1, 1]} : vector<8x36xf32> to vector<8x1xf32>
    %213 = vector.broadcast %212 : vector<8x1xf32> to vector<8x256xf32>
    %214 = arith.addf %211, %213 : vector<8x256xf32>
    %cst_42 = arith.constant 0.000000e+00 : f32
    %215 = vector.broadcast %cst_42 : f32 to vector<8x256xf32>
    %216 = arith.subf %215, %214 : vector<8x256xf32>
    %217 = math.exp %216 : vector<8x256xf32>
    %cst_43 = arith.constant 1.000000e+00 : f32
    %218 = vector.broadcast %cst_43 : f32 to vector<8x256xf32>
    %219 = arith.addf %218, %217 : vector<8x256xf32>
    %220 = tpu.reciprocal %219 {approx = true} : vector<8x256xf32> -> vector<8x256xf32>
    %221 = arith.mulf %214, %220 : vector<8x256xf32>
    %222 = vector.extract_strided_slice %2 {offsets = [0, 34], sizes = [8, 1], strides = [1, 1]} : vector<8x36xf32> to vector<8x1xf32>
    %223 = vector.broadcast %222 : vector<8x1xf32> to vector<8x256xf32>
    %224 = arith.mulf %221, %223 : vector<8x256xf32>
    %225 = vector.extract_strided_slice %2 {offsets = [0, 35], sizes = [8, 1], strides = [1, 1]} : vector<8x36xf32> to vector<8x1xf32>
    %226 = vector.broadcast %225 : vector<8x1xf32> to vector<8x256xf32>
    %227 = arith.addf %224, %226 : vector<8x256xf32>
    %cst_44 = arith.constant 0.000000e+00 : f32
    %228 = vector.broadcast %cst_44 : f32 to vector<8x256xf32>
    %229 = arith.subf %228, %227 : vector<8x256xf32>
    %230 = math.exp %229 : vector<8x256xf32>
    %cst_45 = arith.constant 1.000000e+00 : f32
    %231 = vector.broadcast %cst_45 : f32 to vector<8x256xf32>
    %232 = arith.addf %231, %230 : vector<8x256xf32>
    %233 = arith.divf %227, %232 : vector<8x256xf32>
    %234 = arith.addf %233, %1 : vector<8x256xf32>
    %c0_46 = arith.constant 0 : index
    %c0_47 = arith.constant 0 : index
    %c0_48 = arith.constant 0 : index
    %235 = vector.load %arg6[%c0_46, %c0_47, %c0_48] : memref<1x8x256xf32, #tpu.memory_space<vmem>>, vector<1x8x256xf32>
    %236 = vector.shape_cast %235 : vector<1x8x256xf32> to vector<8x256xf32>
    %237 = vector.shape_cast %234 : vector<8x256xf32> to vector<1x8x256xf32>
    tpu.vector_store %arg6[%c0_46, %c0_47, %c0_48], %237 {strides = array<i32>} : memref<1x8x256xf32, #tpu.memory_space<vmem>>, vector<1x8x256xf32>,
    return
  }
  func.func @transform_0(%arg0: i32) -> (i32, i32, i32) {
    %c0_i32 = arith.constant 0 : i32
    %c0_i32_0 = arith.constant 0 : i32
    %c0_i32_1 = arith.constant 0 : i32
    return %arg0, %c0_i32, %c0_i32_0 : i32, i32, i32
  }
  func.func @transform_1(%arg0: i32) -> (i32, i32) {
    %c0_i32 = arith.constant 0 : i32
    %c0_i32_0 = arith.constant 0 : i32
    %c0_i32_1 = arith.constant 0 : i32
    return %c0_i32, %c0_i32_0 : i32, i32
  }
  func.func @transform_2(%arg0: i32) -> (i32, i32) {
    %c0_i32 = arith.constant 0 : i32
    %c0_i32_0 = arith.constant 0 : i32
    %c0_i32_1 = arith.constant 0 : i32
    return %c0_i32, %c0_i32_0 : i32, i32
  }
  func.func @transform_3(%arg0: i32) -> (i32, i32) {
    %c0_i32 = arith.constant 0 : i32
    %c0_i32_0 = arith.constant 0 : i32
    %c0_i32_1 = arith.constant 0 : i32
    return %c0_i32, %c0_i32_0 : i32, i32
  }
  func.func @transform_4(%arg0: i32) -> (i32, i32) {
    %c0_i32 = arith.constant 0 : i32
    %c0_i32_0 = arith.constant 0 : i32
    %c0_i32_1 = arith.constant 0 : i32
    return %c0_i32, %c0_i32_0 : i32, i32
  }
  func.func @transform_5(%arg0: i32) -> (i32, i32, i32) {
    %c0_i32 = arith.constant 0 : i32
    %c0_i32_0 = arith.constant 0 : i32
    %c0_i32_1 = arith.constant 0 : i32
    return %arg0, %c0_i32, %c0_i32_0 : i32, i32, i32
  }
}

</mosaic_0001>

<llo_original>
// kernel: tpu_custom_call.1
$region0: #{tpu_custom_call.1}
  #allocation0 [shape = 'u32[]', space=smem, size = 0x4, offset = 0x4, fixed_abs, tag = 'smem constant byte address 0x4 - core index']
  #allocation1 [shape = 'u32[144,128]{1,0:T(1,128)}', space=vmem, size = 0x12000, scoped, tag = 'internal scratch']
  %s0 = inlined_call_operand.hbm [shape: f32[2,8,256], index: 0, kind: input, shape index: {}]
  %s1 = inlined_call_operand.hbm [shape: f32[8,36], index: 1, kind: input, shape index: {}]
  %s2 = inlined_call_operand.hbm [shape: f32[8,256], index: 2, kind: input, shape index: {}]
  %s3 = inlined_call_operand.hbm [shape: f32[8,8], index: 3, kind: input, shape index: {}]
  %s4 = inlined_call_operand.hbm [shape: f32[8,8], index: 4, kind: input, shape index: {}]
  %s5 = inlined_call_operand.hbm [shape: f32[2,8,256], index: 5, kind: output, shape index: {}]
  %s6 = sld [smem:[#allocation0]]
  $region73: #{tpu_custom_call.1} parent=0
    _
  %s8 = ssub.s32 1, %s6
  %s9 = scalar_select 0, %s8, %s6
  $region1: #{tpu_custom_call.1} parent=0
    #allocation2 [shape = 'u8[16384]{0}', space=vmem, size = 0x4000, scoped, tag = 'input window, operand 0']
    #allocation3 [shape = 's32[2]{0}', space=sflag, size = 0x8, scoped, tag = 'scoped memory for tpu_custom_call.1']
    #allocation4 [shape = 's32[2]{0}', space=sflag, size = 0x8, scoped, tag = 'scoped memory for tpu_custom_call.1']
    #allocation5 [shape = 'u8[4096]{0}', space=vmem, size = 0x1000, scoped, tag = 'input window, operand 1, single buffered']
    #allocation6 [shape = 's32[1]{0}', space=sflag, size = 0x4, scoped, tag = 'scoped memory for tpu_custom_call.1']
    #allocation7 [shape = 'u8[8192]{0}', space=vmem, size = 0x2000, scoped, tag = 'input window, operand 2, single buffered']
    #allocation8 [shape = 'u8[4096]{0}', space=vmem, size = 0x1000, scoped, tag = 'input window, operand 3, single buffered']
    #allocation9 [shape = 's32[1]{0}', space=sflag, size = 0x4, scoped, tag = 'scoped memory for tpu_custom_call.1']
    #allocation10 [shape = 'u8[4096]{0}', space=vmem, size = 0x1000, scoped, tag = 'input window, operand 4, single buffered']
    #allocation11 [shape = 'u8[16384]{0}', space=vmem, size = 0x4000, scoped, tag = 'output window, operand 0']
    %10 = vsyncpa [#allocation3], 0
    %s11 = scalar_lea.sflag [#allocation3], 1
    %12 = vsyncpa %s11, 0
    %13 = vsyncpa [#allocation6], 0
    %14 = vsyncpa [#allocation9], 0
    %15 = vsyncpa [#allocation4], 0
    %s16 = scalar_lea.sflag [#allocation4], 1
    %17 = vsyncpa %s16, 0
    loop: start=0, step=1, limit=4
    $region2: #{tpu_custom_call.1} parent=1 // loop_pre_header
      _
    $region3: #{tpu_custom_call.1} parent=1 // loop_header
      %s19 = sphi 0, %s23
      %p20 = scmp.ge.s32.totalorder %s19, 4
      %s29 = sphi 0, %s31
      %s32 = sphi 0, %s29
      %s33 = sphi 0, %s32
      %s49 = sphi 0, %s33
      %s53 = sphi 0, %s53
      %s55 = sphi 0, %s53
      %s56 = sphi 0, %s55
      %s70 = sphi 0, %s56
      %s74 = sphi 0, %s74
      %s76 = sphi 0, %s74
      %s77 = sphi 0, %s76
      %s91 = sphi 0, %s77
      %s95 = sphi 0, %s95
      %s97 = sphi 0, %s95
      %s98 = sphi 0, %s97
      %s112 = sphi 0, %s98
      %s116 = sphi 0, %s116
      %s118 = sphi 0, %s116
      %s119 = sphi 0, %s118
      %s133 = sphi 0, %s119
      %s139 = sphi 0, %s141
      %s142 = sphi 0, %s139
      %s143 = sphi 0, %s142
      %s159 = sphi 0, %s143
    $region4: #{tpu_custom_call.1} parent=1 // loop_header_branch
      %22 = sbr.rel (%p20) target = $region8
    $region5: #{tpu_custom_call.1} parent=1 // loop_body
      %s24 = ssub.s32 %s19, 1
      %s25 = ssub.s32 %s19, 2
      %s26 = sadd.s32 %s19, 1
      %s27 = ssub.s32 %s19, %s26
      %p28 = scmp.eq.s32.totalorder %s27, 0
      %s30 = sadd.s32 %s29, 1
      %s31 = scalar_select %p28, %s29, %s30
      %p34 = pneg %p28
      %p35 = scmp.eq.s32.totalorder %s19, 1
      %p36 = por %p34, %p35
      %p37 = scmp.ne.s32.totalorder %s29, %s32
      %p38 = scmp.eq.s32.totalorder %s19, 0
      %p39 = por %p37, %p38
      %p40 = scmp.ne.s32.totalorder %s29, %s32
      %p41 = scmp.eq.s32.totalorder %s24, 1
      %p42 = por %p40, %p41
      %p43 = scmp.ne.s32.totalorder %s32, %s33
      %p44 = scmp.eq.s32.totalorder %s24, 0
      %p45 = por %p43, %p44
      %p46 = scmp.ne.s32.totalorder %s32, %s33
      %p47 = scmp.eq.s32.totalorder %s25, 1
      %p48 = por %p46, %p47
      %p50 = scmp.ne.s32.totalorder %s33, %s49
      %p51 = scmp.eq.s32.totalorder %s25, 0
      %p52 = por %p50, %p51
      %s54 = sadd.s32 %s53, 1
      %p57 = scmp.eq.s32.totalorder %s19, 1
      %p58 = scmp.ne.s32.totalorder %s53, %s55
      %p59 = scmp.eq.s32.totalorder %s19, 0
      %p60 = por %p58, %p59
      %p61 = scmp.ne.s32.totalorder %s53, %s55
      %p62 = scmp.eq.s32.totalorder %s24, 1
      %p63 = por %p61, %p62
      %p64 = scmp.ne.s32.totalorder %s55, %s56
      %p65 = scmp.eq.s32.totalorder %s24, 0
      %p66 = por %p64, %p65
      %p67 = scmp.ne.s32.totalorder %s55, %s56
      %p68 = scmp.eq.s32.totalorder %s25, 1
      %p69 = por %p67, %p68
      %p71 = scmp.ne.s32.totalorder %s56, %s70
      %p72 = scmp.eq.s32.totalorder %s25, 0
      %p73 = por %p71, %p72
      %s75 = sadd.s32 %s74, 1
      %p78 = scmp.eq.s32.totalorder %s19, 1
      %p79 = scmp.ne.s32.totalorder %s74, %s76
      %p80 = scmp.eq.s32.totalorder %s19, 0
      %p81 = por %p79, %p80
      %p82 = scmp.ne.s32.totalorder %s74, %s76
      %p83 = scmp.eq.s32.totalorder %s24, 1
      %p84 = por %p82, %p83
      %p85 = scmp.ne.s32.totalorder %s76, %s77
      %p86 = scmp.eq.s32.totalorder %s24, 0
      %p87 = por %p85, %p86
      %p88 = scmp.ne.s32.totalorder %s76, %s77
      %p89 = scmp.eq.s32.totalorder %s25, 1
      %p90 = por %p88, %p89
      %p92 = scmp.ne.s32.totalorder %s77, %s91
      %p93 = scmp.eq.s32.totalorder %s25, 0
      %p94 = por %p92, %p93
      %s96 = sadd.s32 %s95, 1
      %p99 = scmp.eq.s32.totalorder %s19, 1
      %p100 = scmp.ne.s32.totalorder %s95, %s97
      %p101 = scmp.eq.s32.totalorder %s19, 0
      %p102 = por %p100, %p101
      %p103 = scmp.ne.s32.totalorder %s95, %s97
      %p104 = scmp.eq.s32.totalorder %s24, 1
      %p105 = por %p103, %p104
      %p106 = scmp.ne.s32.totalorder %s97, %s98
      %p107 = scmp.eq.s32.totalorder %s24, 0
      %p108 = por %p106, %p107
      %p109 = scmp.ne.s32.totalorder %s97, %s98
      %p110 = scmp.eq.s32.totalorder %s25, 1
      %p111 = por %p109, %p110
      %p113 = scmp.ne.s32.totalorder %s98, %s112
      %p114 = scmp.eq.s32.totalorder %s25, 0
      %p115 = por %p113, %p114
      %s117 = sadd.s32 %s116, 1
      %p120 = scmp.eq.s32.totalorder %s19, 1
      %p121 = scmp.ne.s32.totalorder %s116, %s118
      %p122 = scmp.eq.s32.totalorder %s19, 0
      %p123 = por %p121, %p122
      %p124 = scmp.ne.s32.totalorder %s116, %s118
      %p125 = scmp.eq.s32.totalorder %s24, 1
      %p126 = por %p124, %p125
      %p127 = scmp.ne.s32.totalorder %s118, %s119
      %p128 = scmp.eq.s32.totalorder %s24, 0
      %p129 = por %p127, %p128
      %p130 = scmp.ne.s32.totalorder %s118, %s119
      %p131 = scmp.eq.s32.totalorder %s25, 1
      %p132 = por %p130, %p131
      %p134 = scmp.ne.s32.totalorder %s119, %s133
      %p135 = scmp.eq.s32.totalorder %s25, 0
      %p136 = por %p134, %p135
      %s137 = ssub.s32 %s19, %s26
      %p138 = scmp.eq.s32.totalorder %s137, 0
      %s140 = sadd.s32 %s139, 1
      %s141 = scalar_select %p138, %s139, %s140
      %p144 = pneg %p138
      %p145 = scmp.eq.s32.totalorder %s19, 1
      %p146 = por %p144, %p145
      %p147 = scmp.ne.s32.totalorder %s139, %s142
      %p148 = scmp.eq.s32.totalorder %s19, 0
      %p149 = por %p147, %p148
      %p150 = scmp.ne.s32.totalorder %s139, %s142
      %p151 = scmp.eq.s32.totalorder %s24, 1
      %p152 = por %p150, %p151
      %p153 = scmp.ne.s32.totalorder %s142, %s143
      %p154 = scmp.eq.s32.totalorder %s24, 0
      %p155 = por %p153, %p154
      %p156 = scmp.ne.s32.totalorder %s142, %s143
      %p157 = scmp.eq.s32.totalorder %s25, 1
      %p158 = por %p156, %p157
      %p160 = scmp.ne.s32.totalorder %s143, %s159
      %p161 = scmp.eq.s32.totalorder %s25, 0
      %p162 = por %p160, %p161
      %p163 = scmp.le.s32.totalorder 1, %s19
      %p164 = scmp.lt.s32.totalorder %s19, 3
      %p165 = pnand %p163, %p164
      %p166 = pneg %p165
      // Predicated region
      $region9: #{tpu_custom_call.1} parent=5 // pred_check
        _
      $region10: #{tpu_custom_call.1} parent=5 // pred_check_branch
        %168 = sbr.rel (%p165) target = $region12
      $region11: #{tpu_custom_call.1} parent=5 // pred_region
        %s169 = ssub.s32 %s19, 1
        // Predicated region
        $region13: #{tpu_custom_call.1} parent=11 // pred_check
          %p170 = pneg %p66
        $region14: #{tpu_custom_call.1} parent=11 // pred_check_branch
          %172 = sbr.rel (%p170) target = $region16
        $region15: #{tpu_custom_call.1} parent=11 // pred_region
          %s174 = ssub.s32 128, 128
          %175 = vsyncadd [#allocation6], %s174
          %s177 = sshll.u32 [#allocation5], 4
          %s178 = int_to_ptr.vmem [resolvable:$true] %s177
          %180 = dma.hbm_to_vmem [thread:$0]  %s1, 128, %s178, [#allocation6]
        $region16: #{tpu_custom_call.1} parent=11 // pred_fallthru
          _
        // Predicated region
        $region17: #{tpu_custom_call.1} parent=11 // pred_check
          %p181 = pneg %p87
        $region18: #{tpu_custom_call.1} parent=11 // pred_check_branch
          %183 = sbr.rel (%p181) target = $region20
        $region19: #{tpu_custom_call.1} parent=11 // pred_region
          %s185 = ssub.s32 256, 256
          %186 = vsyncadd [#allocation6], %s185
          %s188 = sshll.u32 [#allocation7], 4
          %s189 = int_to_ptr.vmem [resolvable:$true] %s188
          %191 = dma.hbm_to_vmem [thread:$0]  %s2, 256, %s189, [#allocation6]
        $region20: #{tpu_custom_call.1} parent=11 // pred_fallthru
          _
        // Predicated region
        $region21: #{tpu_custom_call.1} parent=11 // pred_check
          %p192 = pneg %p108
        $region22: #{tpu_custom_call.1} parent=11 // pred_check_branch
          %194 = sbr.rel (%p192) target = $region24
        $region23: #{tpu_custom_call.1} parent=11 // pred_region
          %s196 = ssub.s32 128, 128
          %197 = vsyncadd [#allocation9], %s196
          %s199 = sshll.u32 [#allocation8], 4
          %s200 = int_to_ptr.vmem [resolvable:$true] %s199
          %202 = dma.hbm_to_vmem [thread:$0]  %s3, 128, %s200, [#allocation9]
        $region24: #{tpu_custom_call.1} parent=11 // pred_fallthru
          _
        // Predicated region
        $region25: #{tpu_custom_call.1} parent=11 // pred_check
          %p203 = pneg %p129
        $region26: #{tpu_custom_call.1} parent=11 // pred_check_branch
          %205 = sbr.rel (%p203) target = $region28
        $region27: #{tpu_custom_call.1} parent=11 // pred_region
          %s207 = ssub.s32 128, 128
          %208 = vsyncadd [#allocation9], %s207
          %s210 = sshll.u32 [#allocation10], 4
          %s211 = int_to_ptr.vmem [resolvable:$true] %s210
          %213 = dma.hbm_to_vmem [thread:$0]  %s4, 128, %s211, [#allocation9]
        $region28: #{tpu_custom_call.1} parent=11 // pred_fallthru
          _
      $region12: #{tpu_custom_call.1} parent=5 // pred_fallthru
        _
      %p214 = scmp.lt.s32.totalorder %s19, 2
      // Predicated region
      $region29: #{tpu_custom_call.1} parent=5 // pred_check
        %p215 = pneg %p214
      $region30: #{tpu_custom_call.1} parent=5 // pred_check_branch
        %217 = sbr.rel (%p215) target = $region32
      $region31: #{tpu_custom_call.1} parent=5 // pred_region
        // Predicated region
        $region33: #{tpu_custom_call.1} parent=31 // pred_check
          %p218 = pneg %p39
        $region34: #{tpu_custom_call.1} parent=31 // pred_check_branch
          %220 = sbr.rel (%p218) target = $region36
        $region35: #{tpu_custom_call.1} parent=31 // pred_region
          %s221 = sand.u32 %s29, 1
          %s222 = scalar_lea.sflag [#allocation3], %s221
          %s223 = sand.u32 %s29, 1
          %s224 = smul.addr %s223, 16
          %s225 = scalar_lea.vmem [#allocation2], %s224
          %s227 = ssub.s32 256, 256
          %228 = vsyncadd %s222, %s227
          %s229 = smul.addr %s19, 2
          %s230 = smul.addr %s229, 128
          %s231 = scalar_lea.hbm %s0, %s230
          %s233 = sshll.u32 %s225, 4
          %s234 = int_to_ptr.vmem [resolvable:$true] %s233
          %236 = dma.hbm_to_vmem [thread:$0]  %s231, 256, %s234, %s222
        $region36: #{tpu_custom_call.1} parent=31 // pred_fallthru
          _
      $region32: #{tpu_custom_call.1} parent=5 // pred_fallthru
        _
      %p237 = scmp.le.s32.totalorder 1, %s19
      %p238 = scmp.lt.s32.totalorder %s19, 3
      %p239 = pnand %p237, %p238
      %p240 = pneg %p239
      // Predicated region
      $region37: #{tpu_custom_call.1} parent=5 // pred_check
        _
      $region38: #{tpu_custom_call.1} parent=5 // pred_check_branch
        %242 = sbr.rel (%p239) target = $region40
      $region39: #{tpu_custom_call.1} parent=5 // pred_region
        %s243 = ssub.s32 %s19, 1
        %s244 = sand.u32 %s32, 1
        %s245 = scalar_lea.sflag [#allocation3], %s244
        %s246 = sand.u32 %s32, 1
        %s247 = smul.addr %s246, 16
        %s248 = scalar_lea.vmem [#allocation2], %s247
        // Predicated region
        $region41: #{tpu_custom_call.1} parent=39 // pred_check
          %p249 = pneg %p45
        $region42: #{tpu_custom_call.1} parent=39 // pred_check_branch
          %251 = sbr.rel (%p249) target = $region44
        $region43: #{tpu_custom_call.1} parent=39 // pred_region
          %252 = dma.done %s245, 256
        $region44: #{tpu_custom_call.1} parent=39 // pred_fallthru
          _
        // Predicated region
        $region45: #{tpu_custom_call.1} parent=39 // pred_check
          %p253 = pneg %p66
        $region46: #{tpu_custom_call.1} parent=39 // pred_check_branch
          %255 = sbr.rel (%p253) target = $region48
        $region47: #{tpu_custom_call.1} parent=39 // pred_region
          %256 = dma.done [#allocation6], 128
        $region48: #{tpu_custom_call.1} parent=39 // pred_fallthru
          _
        // Predicated region
        $region49: #{tpu_custom_call.1} parent=39 // pred_check
          %p257 = pneg %p87
        $region50: #{tpu_custom_call.1} parent=39 // pred_check_branch
          %259 = sbr.rel (%p257) target = $region52
        $region51: #{tpu_custom_call.1} parent=39 // pred_region
          %260 = dma.done [#allocation6], 256
        $region52: #{tpu_custom_call.1} parent=39 // pred_fallthru
          _
        // Predicated region
        $region53: #{tpu_custom_call.1} parent=39 // pred_check
          %p261 = pneg %p108
        $region54: #{tpu_custom_call.1} parent=39 // pred_check_branch
          %263 = sbr.rel (%p261) target = $region56
        $region55: #{tpu_custom_call.1} parent=39 // pred_region
          %264 = dma.done [#allocation9], 128
        $region56: #{tpu_custom_call.1} parent=39 // pred_fallthru
          _
        // Predicated region
        $region57: #{tpu_custom_call.1} parent=39 // pred_check
          %p265 = pneg %p129
        $region58: #{tpu_custom_call.1} parent=39 // pred_check_branch
          %267 = sbr.rel (%p265) target = $region60
        $region59: #{tpu_custom_call.1} parent=39 // pred_region
          %268 = dma.done [#allocation9], 128
        $region60: #{tpu_custom_call.1} parent=39 // pred_fallthru
          _
        %s269 = sand.u32 %s32, 1
        %s270 = scalar_lea.sflag [#allocation3], %s269
        %s271 = sand.u32 %s32, 1
        %s272 = smul.addr %s271, 16
        %s273 = scalar_lea.vmem [#allocation2], %s272
        %p274 = pneg %p45
        %p275 = pneg %p42
        %p276 = pneg %p66
        %p277 = pneg %p63
        %p278 = pneg %p87
        %p279 = pneg %p84
        %p280 = pneg %p108
        %p281 = pneg %p105
        %p282 = pneg %p129
        %p283 = pneg %p126
        %p284 = pneg %p155
        %p285 = pneg %p152
        %s286 = sand.u32 %s142, 1
        %s287 = scalar_lea.sflag [#allocation4], %s286
        %s288 = sand.u32 %s142, 1
        %s289 = smul.addr %s288, 16
        %s290 = scalar_lea.vmem [#allocation11], %s289
        %v291 = vld [vmem:[%s248] sm:$0xff]
        %v292 = vld [vmem:[%s248 + $0x8] sm:$0xff]
        %v293 = vld [vmem:[#allocation5] sm:$0xff]
        %v294 = vld [vmem:[#allocation7] ss:$8 sm:$0x3]
        %s295 = scalar_lea.vmem [#allocation7], 1
        %v296 = vld [vmem:[%s295] ss:$8 sm:$0x3]
        %s297 = scalar_lea.vmem [#allocation7], 2
        %v298 = vld [vmem:[%s297] ss:$8 sm:$0x3]
        %s299 = scalar_lea.vmem [#allocation7], 3
        %v300 = vld [vmem:[%s299] ss:$8 sm:$0x3]
        %301 = vrot.lane.b32.xlu0 %v291, 1
        %v302 = vpop.permute.xlu0 %301
        %303 = vrot.lane.b32.xlu0 %v292, 1
        %v304 = vpop.permute.xlu0 %303
        %v305 = vlaneseq
        %v306 = vand.u32 %v305, 127
        %vm307 = vcmp.lt.s32.totalorder %v306, 1
        %v308 = vsel %vm307, %v302, %v304
        %v309 = vsel %vm307, %v304, %v302
        %v311 = vlaneseq
        %v312 = vshrl.u32 %v311, 7
        %v313 = vsub.s32 0, %v312
        %v314 = vrot.slane %v294, %v313
        %v315 = vlaneseq
        %v316 = vshrl.u32 %v315, 7
        %v317 = vsub.s32 1, %v316
        %v318 = vrot.slane %v294, %v317
        %v321 = vmul.f32 %v314, %v309
        %v322 = vmul.f32 %v318, %v308
        %323 = vrot.lane.b32.xlu0 %v291, 127
        %v324 = vpop.permute.xlu0 %323
        %325 = vrot.lane.b32.xlu0 %v292, 127
        %v326 = vpop.permute.xlu0 %325
        %vm327 = vcmp.lt.s32.totalorder %v306, 127
        %v328 = vsel %vm327, %v324, %v326
        %v329 = vsel %vm327, %v326, %v324
        %v331 = vlaneseq
        %v332 = vshrl.u32 %v331, 7
        %v333 = vsub.s32 0, %v332
        %v334 = vrot.slane %v296, %v333
        %v335 = vlaneseq
        %v336 = vshrl.u32 %v335, 7
        %v337 = vsub.s32 1, %v336
        %v338 = vrot.slane %v296, %v337
        %v341 = vmul.f32 %v334, %v328
        %v342 = vmul.f32 %v338, %v329
        %343 = vrot.lane.b32.xlu0 %v321, 16
        %v344 = vpop.permute.xlu0 %343
        %345 = vrot.lane.b32.xlu0 %v322, 16
        %v346 = vpop.permute.xlu0 %345
        %vm347 = vcmp.lt.s32.totalorder %v306, 16
        %v348 = vsel %vm347, %v344, %v346
        %v349 = vsel %vm347, %v346, %v344
        %351 = vset.pattern.permute.xlu0 0
        %352 = vperm.xlu0 %351, %v293
        %v353 = vpop.permute.xlu0 %352
        %v355 = vmul.f32 %v349, %v353
        %v356 = vmul.f32 %v348, %v353
        %357 = vrot.lane.b32.xlu0 %v291, 16
        %v358 = vpop.permute.xlu0 %357
        %359 = vrot.lane.b32.xlu0 %v292, 16
        %v360 = vpop.permute.xlu0 %359
        %v361 = vsel %vm347, %v358, %v360
        %v362 = vsel %vm347, %v360, %v358
        %363 = vset.pattern.permute.xlu0 1
        %364 = vperm.xlu0 %363, %v293
        %v365 = vpop.permute.xlu0 %364
        %v367 = vmul.f32 %v362, %v365
        %v368 = vmul.f32 %v361, %v365
        %v369 = vadd.f32 %v355, %v367
        %v370 = vadd.f32 %v356, %v368
        %371 = vrot.lane.b32.xlu0 %v341, 16
        %v372 = vpop.permute.xlu0 %371
        %373 = vrot.lane.b32.xlu0 %v342, 16
        %v374 = vpop.permute.xlu0 %373
        %v375 = vsel %vm347, %v372, %v374
        %v376 = vsel %vm347, %v374, %v372
        %377 = vset.pattern.permute.xlu0 2
        %378 = vperm.xlu0 %377, %v293
        %v379 = vpop.permute.xlu0 %378
        %v381 = vmul.f32 %v376, %v379
        %v382 = vmul.f32 %v375, %v379
        %v383 = vadd.f32 %v369, %v381
        %v384 = vadd.f32 %v370, %v382
        %v386 = vlaneseq
        %v387 = vshrl.u32 %v386, 7
        %v388 = vsub.s32 0, %v387
        %v389 = vrot.slane %v298, %v388
        %v390 = vlaneseq
        %v391 = vshrl.u32 %v390, 7
        %v392 = vsub.s32 1, %v391
        %v393 = vrot.slane %v298, %v392
        %v396 = vmul.f32 %v389, %v383
        %v397 = vmul.f32 %v393, %v384
        %398 = vset.pattern.permute.xlu0 3
        %399 = vperm.xlu0 %398, %v293
        %v400 = vpop.permute.xlu0 %399
        %v402 = vmul.f32 %v321, %v400
        %v403 = vmul.f32 %v322, %v400
        %404 = vset.pattern.permute.xlu0 4
        %405 = vperm.xlu0 %404, %v293
        %v406 = vpop.permute.xlu0 %405
        %v408 = vmul.f32 %v291, %v406
        %v409 = vmul.f32 %v292, %v406
        %v410 = vadd.f32 %v402, %v408
        %v411 = vadd.f32 %v403, %v409
        %412 = vset.pattern.permute.xlu0 5
        %413 = vperm.xlu0 %412, %v293
        %v414 = vpop.permute.xlu0 %413
        %v416 = vmul.f32 %v341, %v414
        %v417 = vmul.f32 %v342, %v414
        %v418 = vadd.f32 %v410, %v416
        %v419 = vadd.f32 %v411, %v417
        %v420 = vadd.f32 %v396, %v418
        %v421 = vadd.f32 %v397, %v419
        %422 = vrot.lane.b32.xlu0 %v321, 112
        %v423 = vpop.permute.xlu0 %422
        %424 = vrot.lane.b32.xlu0 %v322, 112
        %v425 = vpop.permute.xlu0 %424
        %vm426 = vcmp.lt.s32.totalorder %v306, 112
        %v427 = vsel %vm426, %v423, %v425
        %v428 = vsel %vm426, %v425, %v423
        %429 = vset.pattern.permute.xlu0 6
        %430 = vperm.xlu0 %429, %v293
        %v431 = vpop.permute.xlu0 %430
        %v433 = vmul.f32 %v427, %v431
        %v434 = vmul.f32 %v428, %v431
        %435 = vrot.lane.b32.xlu0 %v291, 112
        %v436 = vpop.permute.xlu0 %435
        %437 = vrot.lane.b32.xlu0 %v292, 112
        %v438 = vpop.permute.xlu0 %437
        %v439 = vsel %vm426, %v436, %v438
        %v440 = vsel %vm426, %v438, %v436
        %441 = vset.pattern.permute.xlu0 7
        %442 = vperm.xlu0 %441, %v293
        %v443 = vpop.permute.xlu0 %442
        %v445 = vmul.f32 %v439, %v443
        %v446 = vmul.f32 %v440, %v443
        %v447 = vadd.f32 %v433, %v445
        %v448 = vadd.f32 %v434, %v446
        %449 = vrot.lane.b32.xlu0 %v341, 112
        %v450 = vpop.permute.xlu0 %449
        %451 = vrot.lane.b32.xlu0 %v342, 112
        %v452 = vpop.permute.xlu0 %451
        %v453 = vsel %vm426, %v450, %v452
        %v454 = vsel %vm426, %v452, %v450
        %455 = vset.pattern.permute.xlu0 8
        %456 = vperm.xlu0 %455, %v293
        %v457 = vpop.permute.xlu0 %456
        %v459 = vmul.f32 %v453, %v457
        %v460 = vmul.f32 %v454, %v457
        %v461 = vadd.f32 %v447, %v459
        %v462 = vadd.f32 %v448, %v460
        %v464 = vlaneseq
        %v465 = vshrl.u32 %v464, 7
        %v466 = vsub.s32 0, %v465
        %v467 = vrot.slane %v300, %v466
        %v468 = vlaneseq
        %v469 = vshrl.u32 %v468, 7
        %v470 = vsub.s32 1, %v469
        %v471 = vrot.slane %v300, %v470
        %v474 = vmul.f32 %v467, %v461
        %v475 = vmul.f32 %v471, %v462
        %v476 = vadd.f32 %v420, %v474
        %v477 = vadd.f32 %v421, %v475
        %478 = vset.pattern.permute.xlu0 9
        %479 = vperm.xlu0 %478, %v293
        %v480 = vpop.permute.xlu0 %479
        %v482 = vadd.f32 %v476, %v480
        %v483 = vadd.f32 %v477, %v480
        %v484 = vsub.f32 0.0, %v482
        %v485 = vsub.f32 0.0, %v483
        %v486 = vmul.f32 %v484, 1.442695
        %v487 = vpow.pop %v486
        %v488 = vmul.f32 %v485, 1.442695
        %v489 = vpow.pop %v488
        %v490 = vadd.f32 %v487, 1.0
        %v491 = vadd.f32 %v489, 1.0
        %v492 = vrcp.pop %v490
        %v493 = vrcp.pop %v491
        %v494 = vmul.f32 %v482, %v492
        %v495 = vmul.f32 %v483, %v493
        %v496 = vld [vmem:[#allocation8] sm:$0xff]
        %497 = vset.pattern.permute.xlu0 10
        %498 = vperm.xlu0 %497, %v293
        %v499 = vpop.permute.xlu0 %498
        %vm501 = vcmask 64512
        %v503 = vsel %vm501, %v496, 0
        %505 = vmatprep.subr.mxu0 0.0
        %506 = vmatpush1.msra.mxu0 0.0
        %507 = vmatprep.subr.mxu0 0.0
        %508 = vmatpush1.msra.mxu0 0.0
        %509 = vmatprep.subr.mxu0 0.0
        %510 = vmatpush1.msra.mxu0 0.0
        %511 = vmatprep.subr.mxu0 0.0
        %512 = vmatpush1.msra.mxu0 0.0
        %513 = vmatprep.subr.mxu0 0.0
        %514 = vmatpush1.msra.mxu0 0.0
        %515 = vmatprep.subr.mxu0 0.0
        %516 = vmatpush1.msra.mxu0 0.0
        %517 = vmatprep.subr.mxu0 0.0
        %518 = vmatpush1.msra.mxu0 0.0
        %519 = vmatprep.subr.mxu0 0.0
        %520 = vmatpush1.msra.mxu0 0.0
        %521 = vmatprep.subr.mxu0 0.0
        %522 = vmatpush1.msra.mxu0 0.0
        %523 = vmatprep.subr.mxu0 0.0
        %524 = vmatpush1.msra.mxu0 0.0
        %525 = vmatprep.subr.mxu0 0.0
        %526 = vmatpush1.msra.mxu0 0.0
        %527 = vmatprep.subr.mxu0 0.0
        %528 = vmatpush1.msra.mxu0 0.0
        %529 = vmatprep.subr.mxu0 0.0
        %530 = vmatpush1.msra.mxu0 0.0
        %531 = vmatprep.subr.mxu0 0.0
        %532 = vmatpush1.msra.mxu0 0.0
        %533 = vmatprep.subr.mxu0 0.0
        %534 = vmatpush1.msra.mxu0 0.0
        %535 = vmatprep.subr.mxu0 %v495
        %536 = vmatpush1.msra.mxu0 %v494
        %537 = vmatprep.subr.mxu0 0.0
        %538 = vmatpush2.msra.mxu0 0.0
        %539 = vmatprep.subr.mxu0 0.0
        %540 = vmatpush2.msra.mxu0 0.0
        %541 = vmatprep.subr.mxu0 0.0
        %542 = vmatpush2.msra.mxu0 0.0
        %543 = vmatprep.subr.mxu0 0.0
        %544 = vmatpush2.msra.mxu0 0.0
        %545 = vmatprep.subr.mxu0 0.0
        %546 = vmatpush2.msra.mxu0 0.0
        %547 = vmatprep.subr.mxu0 0.0
        %548 = vmatpush2.msra.mxu0 0.0
        %549 = vmatprep.subr.mxu0 0.0
        %550 = vmatpush2.msra.mxu0 0.0
        %551 = vmatprep.subr.mxu0 0.0
        %552 = vmatpush2.msra.mxu0 0.0
        %553 = vmatprep.subr.mxu0 0.0
        %554 = vmatpush2.msra.mxu0 0.0
        %555 = vmatprep.subr.mxu0 0.0
        %556 = vmatpush2.msra.mxu0 0.0
        %557 = vmatprep.subr.mxu0 0.0
        %558 = vmatpush2.msra.mxu0 0.0
        %559 = vmatprep.subr.mxu0 0.0
        %560 = vmatpush2.msra.mxu0 0.0
        %561 = vmatprep.subr.mxu0 0.0
        %562 = vmatpush2.msra.mxu0 0.0
        %563 = vmatprep.subr.mxu0 0.0
        %564 = vmatpush2.msra.mxu0 0.0
        %565 = vmatprep.subr.mxu0 0.0
        %566 = vmatpush2.msra.mxu0 0.0
        %567 = vmatprep.subr.mxu0 0.0
        %568 = vmatpush2.msra.mxu0 0.0
        %569 = vmatprep.mubr.f32.mxu0 0.0
        %570 = vmatmul.mubr.f32.gmra.mxu0 %v503
        %v571 = vpop.f32.mrf.mxu0
        %v572 = vadd.f32 %v499, %v571
        %v573 = vpop.f32.mrf.mxu0
        %v574 = vadd.f32 %v499, %v573
        %575 = vdwg.mxu0
        %v576 = vsub.f32 0.0, %v572
        %v577 = vsub.f32 0.0, %v574
        %v578 = vmul.f32 %v576, 1.442695
        %v579 = vpow.pop %v578
        %v580 = vmul.f32 %v577, 1.442695
        %v581 = vpow.pop %v580
        %v582 = vadd.f32 %v579, 1.0
        %v583 = vadd.f32 %v581, 1.0
        %v584 = vrcp.pop %v582
        %v585 = vrcp.pop %v583
        %v586 = vmul.f32 %v572, %v584
        %v587 = vmul.f32 %v574, %v585
        %588 = vrot.lane.b32.xlu0 %v586, 1
        %v589 = vpop.permute.xlu0 %588
        %590 = vrot.lane.b32.xlu0 %v587, 1
        %v591 = vpop.permute.xlu0 %590
        %v592 = vsel %vm307, %v589, %v591
        %v593 = vsel %vm307, %v591, %v589
        %v594 = vmul.f32 %v314, %v593
        %v595 = vmul.f32 %v318, %v592
        %596 = vrot.lane.b32.xlu0 %v586, 127
        %v597 = vpop.permute.xlu0 %596
        %598 = vrot.lane.b32.xlu0 %v587, 127
        %v599 = vpop.permute.xlu0 %598
        %v600 = vsel %vm327, %v597, %v599
        %v601 = vsel %vm327, %v599, %v597
        %v602 = vmul.f32 %v334, %v600
        %v603 = vmul.f32 %v338, %v601
        %604 = vrot.lane.b32.xlu0 %v594, 16
        %v605 = vpop.permute.xlu0 %604
        %606 = vrot.lane.b32.xlu0 %v595, 16
        %v607 = vpop.permute.xlu0 %606
        %v608 = vsel %vm347, %v605, %v607
        %v609 = vsel %vm347, %v607, %v605
        %610 = vset.pattern.permute.xlu0 11
        %611 = vperm.xlu0 %610, %v293
        %v612 = vpop.permute.xlu0 %611
        %v614 = vmul.f32 %v609, %v612
        %v615 = vmul.f32 %v608, %v612
        %616 = vrot.lane.b32.xlu0 %v586, 16
        %v617 = vpop.permute.xlu0 %616
        %618 = vrot.lane.b32.xlu0 %v587, 16
        %v619 = vpop.permute.xlu0 %618
        %v620 = vsel %vm347, %v617, %v619
        %v621 = vsel %vm347, %v619, %v617
        %622 = vset.pattern.permute.xlu0 12
        %623 = vperm.xlu0 %622, %v293
        %v624 = vpop.permute.xlu0 %623
        %v626 = vmul.f32 %v621, %v624
        %v627 = vmul.f32 %v620, %v624
        %v628 = vadd.f32 %v614, %v626
        %v629 = vadd.f32 %v615, %v627
        %630 = vrot.lane.b32.xlu0 %v602, 16
        %v631 = vpop.permute.xlu0 %630
        %632 = vrot.lane.b32.xlu0 %v603, 16
        %v633 = vpop.permute.xlu0 %632
        %v634 = vsel %vm347, %v631, %v633
        %v635 = vsel %vm347, %v633, %v631
        %636 = vset.pattern.permute.xlu0 13
        %637 = vperm.xlu0 %636, %v293
        %v638 = vpop.permute.xlu0 %637
        %v640 = vmul.f32 %v635, %v638
        %v641 = vmul.f32 %v634, %v638
        %v642 = vadd.f32 %v628, %v640
        %v643 = vadd.f32 %v629, %v641
        %v644 = vmul.f32 %v389, %v642
        %v645 = vmul.f32 %v393, %v643
        %646 = vset.pattern.permute.xlu0 14
        %647 = vperm.xlu0 %646, %v293
        %v648 = vpop.permute.xlu0 %647
        %v650 = vmul.f32 %v594, %v648
        %v651 = vmul.f32 %v595, %v648
        %652 = vset.pattern.permute.xlu0 15
        %653 = vperm.xlu0 %652, %v293
        %v654 = vpop.permute.xlu0 %653
        %v656 = vmul.f32 %v586, %v654
        %v657 = vmul.f32 %v587, %v654
        %v658 = vadd.f32 %v650, %v656
        %v659 = vadd.f32 %v651, %v657
        %660 = vset.pattern.permute.xlu0 16
        %661 = vperm.xlu0 %660, %v293
        %v662 = vpop.permute.xlu0 %661
        %v664 = vmul.f32 %v602, %v662
        %v665 = vmul.f32 %v603, %v662
        %v666 = vadd.f32 %v658, %v664
        %v667 = vadd.f32 %v659, %v665
        %v668 = vadd.f32 %v644, %v666
        %v669 = vadd.f32 %v645, %v667
        %670 = vrot.lane.b32.xlu0 %v594, 112
        %v671 = vpop.permute.xlu0 %670
        %672 = vrot.lane.b32.xlu0 %v595, 112
        %v673 = vpop.permute.xlu0 %672
        %v674 = vsel %vm426, %v671, %v673
        %v675 = vsel %vm426, %v673, %v671
        %676 = vset.pattern.permute.xlu0 17
        %677 = vperm.xlu0 %676, %v293
        %v678 = vpop.permute.xlu0 %677
        %v680 = vmul.f32 %v674, %v678
        %v681 = vmul.f32 %v675, %v678
        %682 = vrot.lane.b32.xlu0 %v586, 112
        %v683 = vpop.permute.xlu0 %682
        %684 = vrot.lane.b32.xlu0 %v587, 112
        %v685 = vpop.permute.xlu0 %684
        %v686 = vsel %vm426, %v683, %v685
        %v687 = vsel %vm426, %v685, %v683
        %688 = vset.pattern.permute.xlu0 18
        %689 = vperm.xlu0 %688, %v293
        %v690 = vpop.permute.xlu0 %689
        %v692 = vmul.f32 %v686, %v690
        %v693 = vmul.f32 %v687, %v690
        %v694 = vadd.f32 %v680, %v692
        %v695 = vadd.f32 %v681, %v693
        %696 = vrot.lane.b32.xlu0 %v602, 112
        %v697 = vpop.permute.xlu0 %696
        %698 = vrot.lane.b32.xlu0 %v603, 112
        %v699 = vpop.permute.xlu0 %698
        %v700 = vsel %vm426, %v697, %v699
        %v701 = vsel %vm426, %v699, %v697
        %702 = vset.pattern.permute.xlu0 19
        %703 = vperm.xlu0 %702, %v293
        %v704 = vpop.permute.xlu0 %703
        %v706 = vmul.f32 %v700, %v704
        %v707 = vmul.f32 %v701, %v704
        %v708 = vadd.f32 %v694, %v706
        %v709 = vadd.f32 %v695, %v707
        %v710 = vmul.f32 %v467, %v708
        %v711 = vmul.f32 %v471, %v709
        %v712 = vadd.f32 %v668, %v710
        %v713 = vadd.f32 %v669, %v711
        %714 = vset.pattern.permute.xlu0 20
        %715 = vperm.xlu0 %714, %v293
        %v716 = vpop.permute.xlu0 %715
        %v718 = vmul.f32 %v586, %v716
        %v719 = vmul.f32 %v587, %v716
        %v720 = vadd.f32 %v712, %v718
        %v721 = vadd.f32 %v713, %v719
        %722 = vset.pattern.permute.xlu0 21
        %723 = vperm.xlu0 %722, %v293
        %v724 = vpop.permute.xlu0 %723
        %v726 = vadd.f32 %v720, %v724
        %v727 = vadd.f32 %v721, %v724
        %v728 = vsub.f32 0.0, %v726
        %v729 = vsub.f32 0.0, %v727
        %v730 = vmul.f32 %v728, 1.442695
        %v731 = vpow.pop %v730
        %v732 = vmul.f32 %v729, 1.442695
        %v733 = vpow.pop %v732
        %v734 = vadd.f32 %v731, 1.0
        %v735 = vadd.f32 %v733, 1.0
        %v736 = vrcp.pop %v734
        %v737 = vrcp.pop %v735
        %v738 = vmul.f32 %v726, %v736
        %v739 = vmul.f32 %v727, %v737
        %v740 = vld [vmem:[#allocation10] sm:$0xff]
        %741 = vset.pattern.permute.xlu0 22
        %742 = vperm.xlu0 %741, %v293
        %v743 = vpop.permute.xlu0 %742
        %v746 = vsel %vm501, %v740, 0
        %748 = vmatprep.subr.mxu0 0.0
        %749 = vmatpush1.msra.mxu0 0.0
        %750 = vmatprep.subr.mxu0 0.0
        %751 = vmatpush1.msra.mxu0 0.0
        %752 = vmatprep.subr.mxu0 0.0
        %753 = vmatpush1.msra.mxu0 0.0
        %754 = vmatprep.subr.mxu0 0.0
        %755 = vmatpush1.msra.mxu0 0.0
        %756 = vmatprep.subr.mxu0 0.0
        %757 = vmatpush1.msra.mxu0 0.0
        %758 = vmatprep.subr.mxu0 0.0
        %759 = vmatpush1.msra.mxu0 0.0
        %760 = vmatprep.subr.mxu0 0.0
        %761 = vmatpush1.msra.mxu0 0.0
        %762 = vmatprep.subr.mxu0 0.0
        %763 = vmatpush1.msra.mxu0 0.0
        %764 = vmatprep.subr.mxu0 0.0
        %765 = vmatpush1.msra.mxu0 0.0
        %766 = vmatprep.subr.mxu0 0.0
        %767 = vmatpush1.msra.mxu0 0.0
        %768 = vmatprep.subr.mxu0 0.0
        %769 = vmatpush1.msra.mxu0 0.0
        %770 = vmatprep.subr.mxu0 0.0
        %771 = vmatpush1.msra.mxu0 0.0
        %772 = vmatprep.subr.mxu0 0.0
        %773 = vmatpush1.msra.mxu0 0.0
        %774 = vmatprep.subr.mxu0 0.0
        %775 = vmatpush1.msra.mxu0 0.0
        %776 = vmatprep.subr.mxu0 0.0
        %777 = vmatpush1.msra.mxu0 0.0
        %778 = vmatprep.subr.mxu0 %v739
        %779 = vmatpush1.msra.mxu0 %v738
        %780 = vmatprep.subr.mxu0 0.0
        %781 = vmatpush2.msra.mxu0 0.0
        %782 = vmatprep.subr.mxu0 0.0
        %783 = vmatpush2.msra.mxu0 0.0
        %784 = vmatprep.subr.mxu0 0.0
        %785 = vmatpush2.msra.mxu0 0.0
        %786 = vmatprep.subr.mxu0 0.0
        %787 = vmatpush2.msra.mxu0 0.0
        %788 = vmatprep.subr.mxu0 0.0
        %789 = vmatpush2.msra.mxu0 0.0
        %790 = vmatprep.subr.mxu0 0.0
        %791 = vmatpush2.msra.mxu0 0.0
        %792 = vmatprep.subr.mxu0 0.0
        %793 = vmatpush2.msra.mxu0 0.0
        %794 = vmatprep.subr.mxu0 0.0
        %795 = vmatpush2.msra.mxu0 0.0
        %796 = vmatprep.subr.mxu0 0.0
        %797 = vmatpush2.msra.mxu0 0.0
        %798 = vmatprep.subr.mxu0 0.0
        %799 = vmatpush2.msra.mxu0 0.0
        %800 = vmatprep.subr.mxu0 0.0
        %801 = vmatpush2.msra.mxu0 0.0
        %802 = vmatprep.subr.mxu0 0.0
        %803 = vmatpush2.msra.mxu0 0.0
        %804 = vmatprep.subr.mxu0 0.0
        %805 = vmatpush2.msra.mxu0 0.0
        %806 = vmatprep.subr.mxu0 0.0
        %807 = vmatpush2.msra.mxu0 0.0
        %808 = vmatprep.subr.mxu0 0.0
        %809 = vmatpush2.msra.mxu0 0.0
        %810 = vmatprep.subr.mxu0 0.0
        %811 = vmatpush2.msra.mxu0 0.0
        %812 = vmatprep.mubr.f32.mxu0 0.0
        %813 = vmatmul.mubr.f32.gmra.mxu0 %v746
        %v814 = vpop.f32.mrf.mxu0
        %v815 = vadd.f32 %v743, %v814
        %v816 = vpop.f32.mrf.mxu0
        %v817 = vadd.f32 %v743, %v816
        %818 = vdwg.mxu0
        %v819 = vsub.f32 0.0, %v815
        %v820 = vsub.f32 0.0, %v817
        %v821 = vmul.f32 %v819, 1.442695
        %v822 = vpow.pop %v821
        %v823 = vmul.f32 %v820, 1.442695
        %v824 = vpow.pop %v823
        %v825 = vadd.f32 %v822, 1.0
        %v826 = vadd.f32 %v824, 1.0
        %v827 = vrcp.pop %v825
        %v828 = vrcp.pop %v826
        %v829 = vmul.f32 %v815, %v827
        %v830 = vmul.f32 %v817, %v828
        %831 = vrot.lane.b32.xlu0 %v829, 1
        %v832 = vpop.permute.xlu0 %831
        %833 = vrot.lane.b32.xlu0 %v830, 1
        %v834 = vpop.permute.xlu0 %833
        %v835 = vsel %vm307, %v832, %v834
        %v836 = vsel %vm307, %v834, %v832
        %v837 = vmul.f32 %v314, %v836
        %v838 = vmul.f32 %v318, %v835
        %839 = vrot.lane.b32.xlu0 %v829, 127
        %v840 = vpop.permute.xlu0 %839
        %841 = vrot.lane.b32.xlu0 %v830, 127
        %v842 = vpop.permute.xlu0 %841
        %v843 = vsel %vm327, %v840, %v842
        %v844 = vsel %vm327, %v842, %v840
        %v845 = vmul.f32 %v334, %v843
        %v846 = vmul.f32 %v338, %v844
        %847 = vrot.lane.b32.xlu0 %v837, 16
        %v848 = vpop.permute.xlu0 %847
        %849 = vrot.lane.b32.xlu0 %v838, 16
        %v850 = vpop.permute.xlu0 %849
        %v851 = vsel %vm347, %v848, %v850
        %v852 = vsel %vm347, %v850, %v848
        %853 = vset.pattern.permute.xlu0 23
        %854 = vperm.xlu0 %853, %v293
        %v855 = vpop.permute.xlu0 %854
        %v857 = vmul.f32 %v852, %v855
        %v858 = vmul.f32 %v851, %v855
        %859 = vrot.lane.b32.xlu0 %v829, 16
        %v860 = vpop.permute.xlu0 %859
        %861 = vrot.lane.b32.xlu0 %v830, 16
        %v862 = vpop.permute.xlu0 %861
        %v863 = vsel %vm347, %v860, %v862
        %v864 = vsel %vm347, %v862, %v860
        %865 = vset.pattern.permute.xlu0 24
        %866 = vperm.xlu0 %865, %v293
        %v867 = vpop.permute.xlu0 %866
        %v869 = vmul.f32 %v864, %v867
        %v870 = vmul.f32 %v863, %v867
        %v871 = vadd.f32 %v857, %v869
        %v872 = vadd.f32 %v858, %v870
        %873 = vrot.lane.b32.xlu0 %v845, 16
        %v874 = vpop.permute.xlu0 %873
        %875 = vrot.lane.b32.xlu0 %v846, 16
        %v876 = vpop.permute.xlu0 %875
        %v877 = vsel %vm347, %v874, %v876
        %v878 = vsel %vm347, %v876, %v874
        %879 = vset.pattern.permute.xlu0 25
        %880 = vperm.xlu0 %879, %v293
        %v881 = vpop.permute.xlu0 %880
        %v883 = vmul.f32 %v878, %v881
        %v884 = vmul.f32 %v877, %v881
        %v885 = vadd.f32 %v871, %v883
        %v886 = vadd.f32 %v872, %v884
        %v887 = vmul.f32 %v389, %v885
        %v888 = vmul.f32 %v393, %v886
        %889 = vset.pattern.permute.xlu0 26
        %890 = vperm.xlu0 %889, %v293
        %v891 = vpop.permute.xlu0 %890
        %v893 = vmul.f32 %v837, %v891
        %v894 = vmul.f32 %v838, %v891
        %895 = vset.pattern.permute.xlu0 27
        %896 = vperm.xlu0 %895, %v293
        %v897 = vpop.permute.xlu0 %896
        %v899 = vmul.f32 %v829, %v897
        %v900 = vmul.f32 %v830, %v897
        %v901 = vadd.f32 %v893, %v899
        %v902 = vadd.f32 %v894, %v900
        %903 = vset.pattern.permute.xlu0 28
        %904 = vperm.xlu0 %903, %v293
        %v905 = vpop.permute.xlu0 %904
        %v907 = vmul.f32 %v845, %v905
        %v908 = vmul.f32 %v846, %v905
        %v909 = vadd.f32 %v901, %v907
        %v910 = vadd.f32 %v902, %v908
        %v911 = vadd.f32 %v887, %v909
        %v912 = vadd.f32 %v888, %v910
        %913 = vrot.lane.b32.xlu0 %v837, 112
        %v914 = vpop.permute.xlu0 %913
        %915 = vrot.lane.b32.xlu0 %v838, 112
        %v916 = vpop.permute.xlu0 %915
        %v917 = vsel %vm426, %v914, %v916
        %v918 = vsel %vm426, %v916, %v914
        %919 = vset.pattern.permute.xlu0 29
        %920 = vperm.xlu0 %919, %v293
        %v921 = vpop.permute.xlu0 %920
        %v923 = vmul.f32 %v917, %v921
        %v924 = vmul.f32 %v918, %v921
        %925 = vrot.lane.b32.xlu0 %v829, 112
        %v926 = vpop.permute.xlu0 %925
        %927 = vrot.lane.b32.xlu0 %v830, 112
        %v928 = vpop.permute.xlu0 %927
        %v929 = vsel %vm426, %v926, %v928
        %v930 = vsel %vm426, %v928, %v926
        %931 = vset.pattern.permute.xlu0 30
        %932 = vperm.xlu0 %931, %v293
        %v933 = vpop.permute.xlu0 %932
        %v935 = vmul.f32 %v929, %v933
        %v936 = vmul.f32 %v930, %v933
        %v937 = vadd.f32 %v923, %v935
        %v938 = vadd.f32 %v924, %v936
        %939 = vrot.lane.b32.xlu0 %v845, 112
        %v940 = vpop.permute.xlu0 %939
        %941 = vrot.lane.b32.xlu0 %v846, 112
        %v942 = vpop.permute.xlu0 %941
        %v943 = vsel %vm426, %v940, %v942
        %v944 = vsel %vm426, %v942, %v940
        %945 = vset.pattern.permute.xlu0 31
        %946 = vperm.xlu0 %945, %v293
        %v947 = vpop.permute.xlu0 %946
        %v949 = vmul.f32 %v943, %v947
        %v950 = vmul.f32 %v944, %v947
        %v951 = vadd.f32 %v937, %v949
        %v952 = vadd.f32 %v938, %v950
        %v953 = vmul.f32 %v467, %v951
        %v954 = vmul.f32 %v471, %v952
        %v955 = vadd.f32 %v911, %v953
        %v956 = vadd.f32 %v912, %v954
        %957 = vset.pattern.permute.xlu0 32
        %958 = vperm.xlu0 %957, %v293
        %v959 = vpop.permute.xlu0 %958
        %v961 = vmul.f32 %v829, %v959
        %v962 = vmul.f32 %v830, %v959
        %v963 = vadd.f32 %v955, %v961
        %v964 = vadd.f32 %v956, %v962
        %965 = vset.pattern.permute.xlu0 33
        %966 = vperm.xlu0 %965, %v293
        %v967 = vpop.permute.xlu0 %966
        %v969 = vadd.f32 %v963, %v967
        %v970 = vadd.f32 %v964, %v967
        %v971 = vsub.f32 0.0, %v969
        %v972 = vsub.f32 0.0, %v970
        %v973 = vmul.f32 %v971, 1.442695
        %v974 = vpow.pop %v973
        %v975 = vmul.f32 %v972, 1.442695
        %v976 = vpow.pop %v975
        %v977 = vadd.f32 %v974, 1.0
        %v978 = vadd.f32 %v976, 1.0
        %v979 = vrcp.pop %v977
        %v980 = vrcp.pop %v978
        %v981 = vmul.f32 %v969, %v979
        %v982 = vmul.f32 %v970, %v980
        %983 = vset.pattern.permute.xlu0 34
        %984 = vperm.xlu0 %983, %v293
        %v985 = vpop.permute.xlu0 %984
        %v987 = vmul.f32 %v981, %v985
        %v988 = vmul.f32 %v982, %v985
        %989 = vset.pattern.permute.xlu0 35
        %990 = vperm.xlu0 %989, %v293
        %v991 = vpop.permute.xlu0 %990
        %v993 = vadd.f32 %v987, %v991
        %v994 = vadd.f32 %v988, %v991
        %v995 = vsub.f32 0.0, %v993
        %v996 = vsub.f32 0.0, %v994
        %v997 = vmul.f32 %v995, 1.442695
        %v998 = vpow.pop %v997
        %v999 = vmul.f32 %v996, 1.442695
        %v1000 = vpow.pop %v999
        %v1001 = vadd.f32 %v998, 1.0
        %v1002 = vadd.f32 %v1000, 1.0
        %v1003 = vrcp.pop %v1001
        %v1004 = vmul.f32 %v993, %v1003
        %v1005 = vrcp.pop %v1002
        %v1006 = vmul.f32 %v994, %v1005
        %v1007 = vadd.f32 %v1004, %v291
        %v1008 = vadd.f32 %v1006, %v292
        %1009 = vst [vmem:[%s290] sm:$0xff] %v1007
        %1010 = vst [vmem:[%s290 + $0x8] sm:$0xff] %v1008
        %s1011 = sand.u32 %s142, 1
        %s1012 = scalar_lea.sflag [#allocation4], %s1011
        %s1013 = sand.u32 %s142, 1
        %s1014 = smul.addr %s1013, 16
        %s1015 = scalar_lea.vmem [#allocation11], %s1014
        // Predicated region
        $region61: #{tpu_custom_call.1} parent=39 // pred_check
          %p1016 = pneg %p152
        $region62: #{tpu_custom_call.1} parent=39 // pred_check_branch
          %1018 = sbr.rel (%p1016) target = $region64
        $region63: #{tpu_custom_call.1} parent=39 // pred_region
          %s1020 = ssub.s32 256, 256
          %1021 = vsyncadd %s1012, %s1020
          %s1022 = smul.addr %s24, 2
          %s1023 = smul.addr %s1022, 128
          %s1024 = scalar_lea.hbm %s5, %s1023
          %s1026 = sshll.u32 %s1015, 4
          %s1027 = int_to_ptr.vmem [resolvable:$true] %s1026
          %1029 = dma.vmem_to_hbm [thread:$0]  %s1027, 256, %s1024, %s1012
        $region64: #{tpu_custom_call.1} parent=39 // pred_fallthru
          _
      $region40: #{tpu_custom_call.1} parent=5 // pred_fallthru
        _
      %p1030 = scmp.le.s32.totalorder 2, %s19
      // Predicated region
      $region65: #{tpu_custom_call.1} parent=5 // pred_check
        %p1031 = pneg %p1030
      $region66: #{tpu_custom_call.1} parent=5 // pred_check_branch
        %1033 = sbr.rel (%p1031) target = $region68
      $region67: #{tpu_custom_call.1} parent=5 // pred_region
        %s1034 = ssub.s32 %s19, 2
        // Predicated region
        $region69: #{tpu_custom_call.1} parent=67 // pred_check
          %p1035 = pneg %p158
        $region70: #{tpu_custom_call.1} parent=67 // pred_check_branch
          %1037 = sbr.rel (%p1035) target = $region72
        $region71: #{tpu_custom_call.1} parent=67 // pred_region
          %s1038 = sand.u32 %s143, 1
          %s1039 = scalar_lea.sflag [#allocation4], %s1038
          %s1040 = sand.u32 %s143, 1
          %s1041 = smul.addr %s1040, 16
          %s1042 = scalar_lea.vmem [#allocation11], %s1041
          %1043 = dma.done %s1039, 256
        $region72: #{tpu_custom_call.1} parent=67 // pred_fallthru
          _
      $region68: #{tpu_custom_call.1} parent=5 // pred_fallthru
        _
    $region6: #{tpu_custom_call.1} parent=1 // loop_footer
      %s23 = sadd.s32 1, %s19
    $region7: #{tpu_custom_call.1} parent=1 // loop_footer_branch
      %18 = sbr.rel target = $region3
    $region8: #{tpu_custom_call.1} parent=1 // loop_exit
      _
    %1044 = vsyncpa [#allocation3], 1
    %s1045 = scalar_lea.sflag [#allocation3], 1
    %1046 = vsyncpa %s1045, 1
    %1047 = vsyncpa [#allocation6], 1
    %1048 = vsyncpa [#allocation9], 1
    %1049 = vsyncpa [#allocation4], 1
    %s1050 = scalar_lea.sflag [#allocation4], 1
    %1051 = vsyncpa %s1050, 1

</llo_original>
